<compile_context>
chip_gen: v7x
topology: tpu7x:2x2x1
jax: 0.10.0
libtpu: 0.0.40
codegen_flags: <defaults>
</compile_context>

<pallas_src>
import math
import numpy as np
import jax
import jax.numpy as jnp
from jax.experimental import pallas as pl
from jax.experimental.pallas import tpu as pltpu

LEAKY_SLOPE = 0.01  # nn.LeakyReLU() default negative_slope


def _ceil_to(v, m):
    return (v + m - 1) // m * m


# ----------------------------------------------------------------------------
# Fused ResBlock kernel
# ----------------------------------------------------------------------------
def _make_resblock_kernel(in_ch, cin_pad, fch_pad, K, dilate, W, NbHW, OFF):
    kc = (K - 1) // 2

    def kernel(x_ref, m_ref, w1_ref, w2_ref, o_ref,
               z1_ref, z2_ref, st1_ref, st2_ref):
        x = x_ref[...]          # (cin_pad, NbHW) channel-padded activations
        masks = m_ref[...]      # (K*K, NbHW)     per-tap row+col validity {0,1}

        def leaky(v):
            return jnp.where(v >= 0, v, LEAKY_SLOPE * v)

        def conv_same(src, cpad, z_ref, stack_ref, w_aug):
            # Zero only the two OFF-wide flanks; the center is overwritten by
            # the activation copy right below.  Flanks must be finite (0):
            # masked taps multiply by 0 and 0 * <uninitialized VMEM> = NaN.
            # (Not gated on program_id==0 -> megacore-safe under "parallel".)
            z_ref[:, 0:OFF] = jnp.zeros((cpad, OFF), jnp.float32)
            z_ref[:, OFF + NbHW:2 * OFF + NbHW] = jnp.zeros((cpad, OFF),
                                                            jnp.float32)
            z_ref[:, OFF:OFF + NbHW] = src        # lane-aligned full store

            # im2col: one 8-sublane-aligned, full-width store per tap.
            for kh in range(K):
                dh = dilate * (kh - kc)
                for kw in range(K):
                    dw = dilate * (kw - kc)
                    s = dh * W + dw
                    t = kh * K + kw
                    patch = (z_ref[:, OFF + s:OFF + s + NbHW]
                             * masks[t:t + 1, :])
                    stack_ref[t * cpad:(t + 1) * cpad, :] = patch
            # Constant-ones row: bias folded into the matmul contraction.
            stack_ref[K * K * cpad:K * K * cpad + 1, :] = jnp.ones(
                (1, NbHW), jnp.float32)

            # Single lane-dense MXU matmul, f32 accumulation:
            #   (cout, K*K*cpad+1) @ (K*K*cpad+1, NbHW)
            return jnp.dot(w_aug, stack_ref[...],
                           preferred_element_type=jnp.float32)

        # h = LeakyReLU(conv1(x) + b1)                      (fch_pad, NbHW)
        h = leaky(conv_same(x, cin_pad, z1_ref, st1_ref, w1_ref[...]))
        # out = LeakyReLU(x + conv2(h) + b2)                (in_ch, NbHW)
        out = leaky(x[:in_ch, :]
                    + conv_same(h, fch_pad, z2_ref, st2_ref, w2_ref[...]))
        o_ref[...] = out.astype(o_ref.dtype)

    return kernel


# ----------------------------------------------------------------------------
# Host-side packing helpers
# ----------------------------------------------------------------------------
def _pack_weight(w, b, cin, cin_pad, cout, cout_pad, K):
    """(cout, cin, K, K) + (cout,) -> (cout_pad, K*K*cin_pad + 1).

    Column order (kh, kw, cin_pad) matches the im2col stack built in-kernel;
    padded cin/cout slots are zero and the bias is folded in as the last
    column (paired with the constant-ones row appended to the stack).
    """
    wt = jnp.transpose(w.astype(jnp.float32), (0, 2, 3, 1))   # (cout, K, K, cin)
    wt = wt.reshape(cout, K * K, cin)
    wt = jnp.pad(wt, ((0, cout_pad - cout), (0, 0), (0, cin_pad - cin)))
    wt = wt.reshape(cout_pad, K * K * cin_pad)
    bcol = jnp.pad(b.astype(jnp.float32).reshape(cout, 1),
                   ((0, cout_pad - cout), (0, 0)))
    return jnp.concatenate([wt, bcol], axis=1)


def _build_tap_masks(K, dilate, H, W, Nb):
    """(K*K, Nb*H*W) {0,1}: tap (kh,kw) is valid at image-local (row,col)."""
    kc = (K - 1) // 2
    row = np.arange(H * W, dtype=np.int64) // W
    col = np.arange(H * W, dtype=np.int64) % W
    m = np.zeros((K * K, H * W), np.float32)
    for kh in range(K):
        dh = dilate * (kh - kc)
        for kw in range(K):
            dw = dilate * (kw - kc)
            ok = ((row + dh >= 0) & (row + dh < H)
                  & (col + dw >= 0) & (col + dw < W))
            m[kh * K + kw] = ok.astype(np.float32)
    return jnp.asarray(np.tile(m, (1, Nb)))


def _pick_batch_per_step(N, HW, lane_target=4096):
    """Largest divisor Nb of N such that the lane dim Nb*HW stays modest and
    the output block stays lane-dense (multiple of 128 or the full array)."""
    valid = [nb for nb in range(1, N + 1)
             if N % nb == 0 and ((nb * HW) % 128 == 0 or nb == N)]
    small = [nb for nb in valid if nb * HW <= lane_target]
    return max(small) if small else min(valid)


# ----------------------------------------------------------------------------
# Wrapper
# ----------------------------------------------------------------------------
def resblock_pallas(x, w1, b1, w2, b2, *, dilate=1, batch_per_step=None):
    """x: (N, in_ch, H, W) NCHW.  w1: (f_ch, in_ch, K, K), w2: (in_ch, f_ch, K, K)."""
    N, in_ch, H, W = x.shape
    f_ch, cin_w1, K, K_w1 = w1.shape
    assert cin_w1 == in_ch and K_w1 == K and K % 2 == 1
    assert w2.shape == (in_ch, f_ch, K, K)
    kc = (K - 1) // 2
    pad = K // 2 + dilate - 1
    # The PyTorch padding formula gives a 'same'-sized output for these configs.
    assert pad == dilate * kc, "unsupported (non-'same') ResBlock config"

    HW = H * W
    Nb = batch_per_step if batch_per_step is not None else \
        _pick_batch_per_step(N, HW)
    assert N % Nb == 0
    NbHW = Nb * HW
    S = dilate * kc * (W + 1)          # max |tap shift| on the flattened axis
    OFF = _ceil_to(max(S, 1), 128)     # lane-aligned flank width (>= S)

    CIN_PAD = _ceil_to(in_ch, 8)
    FCH_PAD = _ceil_to(f_ch, 8)
    KKC1 = K * K * CIN_PAD
    KKC2 = K * K * FCH_PAD

    # Channels-first, batch folded into the lane axis: (CIN_PAD, N*HW).
    xf = x.astype(jnp.float32).reshape(N, in_ch, HW).transpose(1, 0, 2)
    xf = xf.reshape(in_ch, N * HW)
    xf = jnp.pad(xf, ((0, CIN_PAD - in_ch), (0, 0)))

    w1a = _pack_weight(w1, b1, in_ch, CIN_PAD, f_ch, FCH_PAD, K)  # (FCH_PAD, KKC1+1)
    w2a = _pack_weight(w2, b2, f_ch, FCH_PAD, in_ch, in_ch, K)    # (in_ch,  KKC2+1)
    masks = _build_tap_masks(K, dilate, H, W, Nb)                 # (K*K, NbHW)

    kernel = _make_resblock_kernel(in_ch, CIN_PAD, FCH_PAD, K, dilate, W,
                                   NbHW, OFF)

    flops = 4 * N * HW * K * K * in_ch * f_ch            # two convs, 2 flops/MAC
    bytes_accessed = 4 * (xf.size + in_ch * N * HW + masks.size
                          + w1a.size + w2a.size)

    out_flat = pl.pallas_call(
        kernel,
        out_shape=jax.ShapeDtypeStruct((in_ch, N * HW), jnp.float32),
        grid=(N // Nb,),
        in_specs=[
            pl.BlockSpec((CIN_PAD, NbHW), lambda i: (0, i)),        # x (padded)
            pl.BlockSpec((K * K, NbHW), lambda i: (0, 0)),          # tap masks
            pl.BlockSpec((FCH_PAD, KKC1 + 1), lambda i: (0, 0)),    # w1 (+bias)
            pl.BlockSpec((in_ch, KKC2 + 1), lambda i: (0, 0)),      # w2 (+bias)
        ],
        out_specs=pl.BlockSpec((in_ch, NbHW), lambda i: (0, i)),
        scratch_shapes=[
            pltpu.VMEM((CIN_PAD, NbHW + 2 * OFF), jnp.float32),     # shift buf 1
            pltpu.VMEM((FCH_PAD, NbHW + 2 * OFF), jnp.float32),     # shift buf 2
            pltpu.VMEM((KKC1 + 1, NbHW), jnp.float32),              # im2col stack 1
            pltpu.VMEM((KKC2 + 1, NbHW), jnp.float32),              # im2col stack 2
        ],
        compiler_params=pltpu.CompilerParams(
            dimension_semantics=("parallel",)),
        cost_estimate=pl.CostEstimate(
            flops=flops, transcendentals=0, bytes_accessed=bytes_accessed),
    )(xf, masks, w1a, w2a)

    out = out_flat.reshape(in_ch, N, HW).transpose(1, 0, 2)
    return out.reshape(N, in_ch, H, W)


# ----------------------------------------------------------------------------
# Plain-XLA reference of the same forward pass (for in-script validation).
# ----------------------------------------------------------------------------
def _conv2d_ref(x, w, b, dilate):
    K = w.shape[-1]
    pad = K // 2 + dilate - 1
    out = jax.lax.conv_general_dilated(
        x.astype(jnp.float32), w.astype(jnp.float32),
        window_strides=(1, 1),
        padding=((pad, pad), (pad, pad)),
        rhs_dilation=(dilate, dilate),
        dimension_numbers=('NCHW', 'OIHW', 'NCHW'))
    return out + b.reshape(1, -1, 1, 1)


def _resblock_ref(x, w1, b1, w2, b2, dilate):
    leaky = lambda v: jnp.where(v >= 0, v, LEAKY_SLOPE * v)
    h = leaky(_conv2d_ref(x, w1, b1, dilate))
    return leaky(x + _conv2d_ref(h, w2, b2, dilate))


# ----------------------------------------------------------------------------
if __name__ == "__main__":
    # ResBlock(in_ch=4, f_ch=8, f_sz=3, dilate=1) on a (2, 4, 16, 16) NCHW input.
    in_ch, f_ch, f_sz, dilate = 4, 8, 3, 1
    N, H, W = 2, 16, 16

    key = jax.random.PRNGKey(0)
    kx, kw1, kb1, kw2, kb2 = jax.random.split(key, 5)

    x = jax.random.normal(kx, (N, in_ch, H, W), jnp.float32)

    # PyTorch-style Conv2d init: U(-1/sqrt(fan_in), 1/sqrt(fan_in)).
    bnd1 = 1.0 / math.sqrt(in_ch * f_sz * f_sz)
    bnd2 = 1.0 / math.sqrt(f_ch * f_sz * f_sz)
    w1 = jax.random.uniform(kw1, (f_ch, in_ch, f_sz, f_sz), jnp.float32, -bnd1, bnd1)
    b1 = jax.random.uniform(kb1, (f_ch,), jnp.float32, -bnd1, bnd1)
    w2 = jax.random.uniform(kw2, (in_ch, f_ch, f_sz, f_sz), jnp.float32, -bnd2, bnd2)
    b2 = jax.random.uniform(kb2, (in_ch,), jnp.float32, -bnd2, bnd2)

    out = resblock_pallas(x, w1, b1, w2, b2, dilate=dilate)
    jax.block_until_ready(out)
    assert out.shape == (N, in_ch, H, W)

    ref = _resblock_ref(x, w1, b1, w2, b2, dilate)
    err = float(jnp.max(jnp.abs(out - ref)))
    assert err < 1e-3, f"max abs error vs reference: {err}"

    print("KERNEL_OK")
</pallas_src>

<mosaic_0001>
module attributes {stable_mosaic.version = 11 : i64} {
  func.func @kernel(%arg0: i32, %arg1: memref<8x512xf32, #tpu.memory_space<vmem>>, %arg2: memref<9x512xf32, #tpu.memory_space<vmem>>, %arg3: memref<8x73xf32, #tpu.memory_space<vmem>>, %arg4: memref<4x73xf32, #tpu.memory_space<vmem>>, %arg5: memref<4x512xf32, #tpu.memory_space<vmem>>, %arg6: memref<8x768xf32, #tpu.memory_space<vmem>>, %arg7: memref<8x768xf32, #tpu.memory_space<vmem>>, %arg8: memref<73x512xf32, #tpu.memory_space<vmem>>, %arg9: memref<73x512xf32, #tpu.memory_space<vmem>>) attributes {dimension_semantics = [#tpu.dimension_semantics<parallel>], iteration_bounds = array<i64: 1>, scalar_prefetch = 0 : i64, scratch_operands = 4 : i64, tpu.core_type = #tpu.core_type<tc>, window_params = [{transform_indices = @transform_0, window_bounds = array<i64: 8, 512>}, {pipeline_mode = #tpu.pipeline_mode<synchronous>, transform_indices = @transform_1, window_bounds = array<i64: 9, 512>}, {pipeline_mode = #tpu.pipeline_mode<synchronous>, transform_indices = @transform_2, window_bounds = array<i64: 8, 73>}, {pipeline_mode = #tpu.pipeline_mode<synchronous>, transform_indices = @transform_3, window_bounds = array<i64: 4, 73>}, {transform_indices = @transform_4, window_bounds = array<i64: 4, 512>}]} {
    %c0 = arith.constant 0 : index
    %c0_0 = arith.constant 0 : index
    %0 = vector.load %arg1[%c0, %c0_0] : memref<8x512xf32, #tpu.memory_space<vmem>>, vector<8x512xf32>
    %c0_1 = arith.constant 0 : index
    %c0_2 = arith.constant 0 : index
    %1 = vector.load %arg2[%c0_1, %c0_2] : memref<9x512xf32, #tpu.memory_space<vmem>>, vector<9x512xf32>
    %c0_3 = arith.constant 0 : index
    %c0_4 = arith.constant 0 : index
    %2 = vector.load %arg3[%c0_3, %c0_4] : memref<8x73xf32, #tpu.memory_space<vmem>>, vector<8x73xf32>
    %cst = arith.constant 0.000000e+00 : f32
    %3 = vector.broadcast %cst : f32 to vector<8x128xf32>
    %c0_5 = arith.constant 0 : index
    %c0_6 = arith.constant 0 : index
    %4 = vector.load %arg6[%c0_5, %c0_6] : memref<8x768xf32, #tpu.memory_space<vmem>>, vector<8x128xf32>
    tpu.vector_store %arg6[%c0_5, %c0_6], %3 {strides = array<i32>} : memref<8x768xf32, #tpu.memory_space<vmem>>, vector<8x128xf32>,
    %cst_7 = arith.constant 0.000000e+00 : f32
    %5 = vector.broadcast %cst_7 : f32 to vector<8x128xf32>
    %c0_8 = arith.constant 0 : index
    %c640 = arith.constant 640 : index
    %6 = vector.load %arg6[%c0_8, %c640] : memref<8x768xf32, #tpu.memory_space<vmem>>, vector<8x128xf32>
    tpu.vector_store %arg6[%c0_8, %c640], %5 {strides = array<i32>} : memref<8x768xf32, #tpu.memory_space<vmem>>, vector<8x128xf32>,
    %c0_9 = arith.constant 0 : index
    %c128 = arith.constant 128 : index
    %7 = vector.load %arg6[%c0_9, %c128] : memref<8x768xf32, #tpu.memory_space<vmem>>, vector<8x512xf32>
    tpu.vector_store %arg6[%c0_9, %c128], %0 {strides = array<i32>} : memref<8x768xf32, #tpu.memory_space<vmem>>, vector<8x512xf32>,
    %c0_10 = arith.constant 0 : index
    %c111 = arith.constant 111 : index
    %8 = vector.load %arg6[%c0_10, %c111] : memref<8x768xf32, #tpu.memory_space<vmem>>, vector<8x512xf32>
    %9 = vector.extract_strided_slice %1 {offsets = [0, 0], sizes = [1, 512], strides = [1, 1]} : vector<9x512xf32> to vector<1x512xf32>
    %10 = vector.broadcast %9 : vector<1x512xf32> to vector<8x512xf32>
    %11 = arith.mulf %8, %10 : vector<8x512xf32>
    %c0_11 = arith.constant 0 : index
    %c0_12 = arith.constant 0 : index
    %12 = vector.load %arg8[%c0_11, %c0_12] : memref<73x512xf32, #tpu.memory_space<vmem>>, vector<8x512xf32>
    tpu.vector_store %arg8[%c0_11, %c0_12], %11 {strides = array<i32>} : memref<73x512xf32, #tpu.memory_space<vmem>>, vector<8x512xf32>,
    %c0_13 = arith.constant 0 : index
    %c112 = arith.constant 112 : index
    %13 = vector.load %arg6[%c0_13, %c112] : memref<8x768xf32, #tpu.memory_space<vmem>>, vector<8x512xf32>
    %14 = vector.extract_strided_slice %1 {offsets = [1, 0], sizes = [1, 512], strides = [1, 1]} : vector<9x512xf32> to vector<1x512xf32>
    %15 = vector.broadcast %14 : vector<1x512xf32> to vector<8x512xf32>
    %16 = arith.mulf %13, %15 : vector<8x512xf32>
    %c8 = arith.constant 8 : index
    %c0_14 = arith.constant 0 : index
    %17 = vector.load %arg8[%c8, %c0_14] : memref<73x512xf32, #tpu.memory_space<vmem>>, vector<8x512xf32>
    tpu.vector_store %arg8[%c8, %c0_14], %16 {strides = array<i32>} : memref<73x512xf32, #tpu.memory_space<vmem>>, vector<8x512xf32>,
    %c0_15 = arith.constant 0 : index
    %c113 = arith.constant 113 : index
    %18 = vector.load %arg6[%c0_15, %c113] : memref<8x768xf32, #tpu.memory_space<vmem>>, vector<8x512xf32>
    %19 = vector.extract_strided_slice %1 {offsets = [2, 0], sizes = [1, 512], strides = [1, 1]} : vector<9x512xf32> to vector<1x512xf32>
    %20 = vector.broadcast %19 : vector<1x512xf32> to vector<8x512xf32>
    %21 = arith.mulf %18, %20 : vector<8x512xf32>
    %c16 = arith.constant 16 : index
    %c0_16 = arith.constant 0 : index
    %22 = vector.load %arg8[%c16, %c0_16] : memref<73x512xf32, #tpu.memory_space<vmem>>, vector<8x512xf32>
    tpu.vector_store %arg8[%c16, %c0_16], %21 {strides = array<i32>} : memref<73x512xf32, #tpu.memory_space<vmem>>, vector<8x512xf32>,
    %c0_17 = arith.constant 0 : index
    %c127 = arith.constant 127 : index
    %23 = vector.load %arg6[%c0_17, %c127] : memref<8x768xf32, #tpu.memory_space<vmem>>, vector<8x512xf32>
    %24 = vector.extract_strided_slice %1 {offsets = [3, 0], sizes = [1, 512], strides = [1, 1]} : vector<9x512xf32> to vector<1x512xf32>
    %25 = vector.broadcast %24 : vector<1x512xf32> to vector<8x512xf32>
    %26 = arith.mulf %23, %25 : vector<8x512xf32>
    %c24 = arith.constant 24 : index
    %c0_18 = arith.constant 0 : index
    %27 = vector.load %arg8[%c24, %c0_18] : memref<73x512xf32, #tpu.memory_space<vmem>>, vector<8x512xf32>
    tpu.vector_store %arg8[%c24, %c0_18], %26 {strides = array<i32>} : memref<73x512xf32, #tpu.memory_space<vmem>>, vector<8x512xf32>,
    %c0_19 = arith.constant 0 : index
    %c128_20 = arith.constant 128 : index
    %28 = vector.load %arg6[%c0_19, %c128_20] : memref<8x768xf32, #tpu.memory_space<vmem>>, vector<8x512xf32>
    %29 = vector.extract_strided_slice %1 {offsets = [4, 0], sizes = [1, 512], strides = [1, 1]} : vector<9x512xf32> to vector<1x512xf32>
    %30 = vector.broadcast %29 : vector<1x512xf32> to vector<8x512xf32>
    %31 = arith.mulf %28, %30 : vector<8x512xf32>
    %c32 = arith.constant 32 : index
    %c0_21 = arith.constant 0 : index
    %32 = vector.load %arg8[%c32, %c0_21] : memref<73x512xf32, #tpu.memory_space<vmem>>, vector<8x512xf32>
    tpu.vector_store %arg8[%c32, %c0_21], %31 {strides = array<i32>} : memref<73x512xf32, #tpu.memory_space<vmem>>, vector<8x512xf32>,
    %c0_22 = arith.constant 0 : index
    %c129 = arith.constant 129 : index
    %33 = vector.load %arg6[%c0_22, %c129] : memref<8x768xf32, #tpu.memory_space<vmem>>, vector<8x512xf32>
    %34 = vector.extract_strided_slice %1 {offsets = [5, 0], sizes = [1, 512], strides = [1, 1]} : vector<9x512xf32> to vector<1x512xf32>
    %35 = vector.broadcast %34 : vector<1x512xf32> to vector<8x512xf32>
    %36 = arith.mulf %33, %35 : vector<8x512xf32>
    %c40 = arith.constant 40 : index
    %c0_23 = arith.constant 0 : index
    %37 = vector.load %arg8[%c40, %c0_23] : memref<73x512xf32, #tpu.memory_space<vmem>>, vector<8x512xf32>
    tpu.vector_store %arg8[%c40, %c0_23], %36 {strides = array<i32>} : memref<73x512xf32, #tpu.memory_space<vmem>>, vector<8x512xf32>,
    %c0_24 = arith.constant 0 : index
    %c143 = arith.constant 143 : index
    %38 = vector.load %arg6[%c0_24, %c143] : memref<8x768xf32, #tpu.memory_space<vmem>>, vector<8x512xf32>
    %39 = vector.extract_strided_slice %1 {offsets = [6, 0], sizes = [1, 512], strides = [1, 1]} : vector<9x512xf32> to vector<1x512xf32>
    %40 = vector.broadcast %39 : vector<1x512xf32> to vector<8x512xf32>
    %41 = arith.mulf %38, %40 : vector<8x512xf32>
    %c48 = arith.constant 48 : index
    %c0_25 = arith.constant 0 : index
    %42 = vector.load %arg8[%c48, %c0_25] : memref<73x512xf32, #tpu.memory_space<vmem>>, vector<8x512xf32>
    tpu.vector_store %arg8[%c48, %c0_25], %41 {strides = array<i32>} : memref<73x512xf32, #tpu.memory_space<vmem>>, vector<8x512xf32>,
    %c0_26 = arith.constant 0 : index
    %c144 = arith.constant 144 : index
    %43 = vector.load %arg6[%c0_26, %c144] : memref<8x768xf32, #tpu.memory_space<vmem>>, vector<8x512xf32>
    %44 = vector.extract_strided_slice %1 {offsets = [7, 0], sizes = [1, 512], strides = [1, 1]} : vector<9x512xf32> to vector<1x512xf32>
    %45 = vector.broadcast %44 : vector<1x512xf32> to vector<8x512xf32>
    %46 = arith.mulf %43, %45 : vector<8x512xf32>
    %c56 = arith.constant 56 : index
    %c0_27 = arith.constant 0 : index
    %47 = vector.load %arg8[%c56, %c0_27] : memref<73x512xf32, #tpu.memory_space<vmem>>, vector<8x512xf32>
    tpu.vector_store %arg8[%c56, %c0_27], %46 {strides = array<i32>} : memref<73x512xf32, #tpu.memory_space<vmem>>, vector<8x512xf32>,
    %c0_28 = arith.constant 0 : index
    %c145 = arith.constant 145 : index
    %48 = vector.load %arg6[%c0_28, %c145] : memref<8x768xf32, #tpu.memory_space<vmem>>, vector<8x512xf32>
    %49 = vector.extract_strided_slice %1 {offsets = [8, 0], sizes = [1, 512], strides = [1, 1]} : vector<9x512xf32> to vector<1x512xf32>
    %50 = vector.broadcast %49 : vector<1x512xf32> to vector<8x512xf32>
    %51 = arith.mulf %48, %50 : vector<8x512xf32>
    %c64 = arith.constant 64 : index
    %c0_29 = arith.constant 0 : index
    %52 = vector.load %arg8[%c64, %c0_29] : memref<73x512xf32, #tpu.memory_space<vmem>>, vector<8x512xf32>
    tpu.vector_store %arg8[%c64, %c0_29], %51 {strides = array<i32>} : memref<73x512xf32, #tpu.memory_space<vmem>>, vector<8x512xf32>,
    %cst_30 = arith.constant 1.000000e+00 : f32
    %53 = vector.broadcast %cst_30 : f32 to vector<1x512xf32>
    %c72 = arith.constant 72 : index
    %c0_31 = arith.constant 0 : index
    %54 = vector.load %arg8[%c72, %c0_31] : memref<73x512xf32, #tpu.memory_space<vmem>>, vector<1x512xf32>
    tpu.vector_store %arg8[%c72, %c0_31], %53 {strides = array<i32>} : memref<73x512xf32, #tpu.memory_space<vmem>>, vector<1x512xf32>,
    %c0_32 = arith.constant 0 : index
    %c0_33 = arith.constant 0 : index
    %55 = vector.load %arg8[%c0_32, %c0_33] : memref<73x512xf32, #tpu.memory_space<vmem>>, vector<73x512xf32>
    %cst_34 = arith.constant dense<0.000000e+00> : vector<8x512xf32>
    %56 = tpu.matmul %2, %55, %cst_34 {dimension_numbers = #tpu.dot_dimension_numbers<[1], [0], [0], [1], [0, 0, 1, 1], [], []>} : vector<8x73xf32>, vector<73x512xf32>, vector<8x512xf32> -> vector<8x512xf32>
    %cst_35 = arith.constant 0.000000e+00 : f32
    %57 = vector.broadcast %cst_35 : f32 to vector<8x512xf32>
    %58 = arith.cmpf oge, %56, %57 : vector<8x512xf32>
    %cst_36 = arith.constant 0.00999999977 : f32
    %59 = vector.broadcast %cst_36 : f32 to vector<8x512xf32>
    %60 = arith.mulf %59, %56 : vector<8x512xf32>
    %61 = arith.select %58, %56, %60 : vector<8x512xi1>, vector<8x512xf32>
    %62 = vector.extract_strided_slice %0 {offsets = [0, 0], sizes = [4, 512], strides = [1, 1]} : vector<8x512xf32> to vector<4x512xf32>
    %c0_37 = arith.constant 0 : index
    %c0_38 = arith.constant 0 : index
    %63 = vector.load %arg4[%c0_37, %c0_38] : memref<4x73xf32, #tpu.memory_space<vmem>>, vector<4x73xf32>
    %cst_39 = arith.constant 0.000000e+00 : f32
    %64 = vector.broadcast %cst_39 : f32 to vector<8x128xf32>
    %c0_40 = arith.constant 0 : index
    %c0_41 = arith.constant 0 : index
    %65 = vector.load %arg7[%c0_40, %c0_41] : memref<8x768xf32, #tpu.memory_space<vmem>>, vector<8x128xf32>
    tpu.vector_store %arg7[%c0_40, %c0_41], %64 {strides = array<i32>} : memref<8x768xf32, #tpu.memory_space<vmem>>, vector<8x128xf32>,
    %cst_42 = arith.constant 0.000000e+00 : f32
    %66 = vector.broadcast %cst_42 : f32 to vector<8x128xf32>
    %c0_43 = arith.constant 0 : index
    %c640_44 = arith.constant 640 : index
    %67 = vector.load %arg7[%c0_43, %c640_44] : memref<8x768xf32, #tpu.memory_space<vmem>>, vector<8x128xf32>
    tpu.vector_store %arg7[%c0_43, %c640_44], %66 {strides = array<i32>} : memref<8x768xf32, #tpu.memory_space<vmem>>, vector<8x128xf32>,
    %c0_45 = arith.constant 0 : index
    %c128_46 = arith.constant 128 : index
    %68 = vector.load %arg7[%c0_45, %c128_46] : memref<8x768xf32, #tpu.memory_space<vmem>>, vector<8x512xf32>
    tpu.vector_store %arg7[%c0_45, %c128_46], %61 {strides = array<i32>} : memref<8x768xf32, #tpu.memory_space<vmem>>, vector<8x512xf32>,
    %c0_47 = arith.constant 0 : index
    %c111_48 = arith.constant 111 : index
    %69 = vector.load %arg7[%c0_47, %c111_48] : memref<8x768xf32, #tpu.memory_space<vmem>>, vector<8x512xf32>
    %70 = vector.extract_strided_slice %1 {offsets = [0, 0], sizes = [1, 512], strides = [1, 1]} : vector<9x512xf32> to vector<1x512xf32>
    %71 = vector.broadcast %70 : vector<1x512xf32> to vector<8x512xf32>
    %72 = arith.mulf %69, %71 : vector<8x512xf32>
    %c0_49 = arith.constant 0 : index
    %c0_50 = arith.constant 0 : index
    %73 = vector.load %arg9[%c0_49, %c0_50] : memref<73x512xf32, #tpu.memory_space<vmem>>, vector<8x512xf32>
    tpu.vector_store %arg9[%c0_49, %c0_50], %72 {strides = array<i32>} : memref<73x512xf32, #tpu.memory_space<vmem>>, vector<8x512xf32>,
    %c0_51 = arith.constant 0 : index
    %c112_52 = arith.constant 112 : index
    %74 = vector.load %arg7[%c0_51, %c112_52] : memref<8x768xf32, #tpu.memory_space<vmem>>, vector<8x512xf32>
    %75 = vector.extract_strided_slice %1 {offsets = [1, 0], sizes = [1, 512], strides = [1, 1]} : vector<9x512xf32> to vector<1x512xf32>
    %76 = vector.broadcast %75 : vector<1x512xf32> to vector<8x512xf32>
    %77 = arith.mulf %74, %76 : vector<8x512xf32>
    %c8_53 = arith.constant 8 : index
    %c0_54 = arith.constant 0 : index
    %78 = vector.load %arg9[%c8_53, %c0_54] : memref<73x512xf32, #tpu.memory_space<vmem>>, vector<8x512xf32>
    tpu.vector_store %arg9[%c8_53, %c0_54], %77 {strides = array<i32>} : memref<73x512xf32, #tpu.memory_space<vmem>>, vector<8x512xf32>,
    %c0_55 = arith.constant 0 : index
    %c113_56 = arith.constant 113 : index
    %79 = vector.load %arg7[%c0_55, %c113_56] : memref<8x768xf32, #tpu.memory_space<vmem>>, vector<8x512xf32>
    %80 = vector.extract_strided_slice %1 {offsets = [2, 0], sizes = [1, 512], strides = [1, 1]} : vector<9x512xf32> to vector<1x512xf32>
    %81 = vector.broadcast %80 : vector<1x512xf32> to vector<8x512xf32>
    %82 = arith.mulf %79, %81 : vector<8x512xf32>
    %c16_57 = arith.constant 16 : index
    %c0_58 = arith.constant 0 : index
    %83 = vector.load %arg9[%c16_57, %c0_58] : memref<73x512xf32, #tpu.memory_space<vmem>>, vector<8x512xf32>
    tpu.vector_store %arg9[%c16_57, %c0_58], %82 {strides = array<i32>} : memref<73x512xf32, #tpu.memory_space<vmem>>, vector<8x512xf32>,
    %c0_59 = arith.constant 0 : index
    %c127_60 = arith.constant 127 : index
    %84 = vector.load %arg7[%c0_59, %c127_60] : memref<8x768xf32, #tpu.memory_space<vmem>>, vector<8x512xf32>
    %85 = vector.extract_strided_slice %1 {offsets = [3, 0], sizes = [1, 512], strides = [1, 1]} : vector<9x512xf32> to vector<1x512xf32>
    %86 = vector.broadcast %85 : vector<1x512xf32> to vector<8x512xf32>
    %87 = arith.mulf %84, %86 : vector<8x512xf32>
    %c24_61 = arith.constant 24 : index
    %c0_62 = arith.constant 0 : index
    %88 = vector.load %arg9[%c24_61, %c0_62] : memref<73x512xf32, #tpu.memory_space<vmem>>, vector<8x512xf32>
    tpu.vector_store %arg9[%c24_61, %c0_62], %87 {strides = array<i32>} : memref<73x512xf32, #tpu.memory_space<vmem>>, vector<8x512xf32>,
    %c0_63 = arith.constant 0 : index
    %c128_64 = arith.constant 128 : index
    %89 = vector.load %arg7[%c0_63, %c128_64] : memref<8x768xf32, #tpu.memory_space<vmem>>, vector<8x512xf32>
    %90 = vector.extract_strided_slice %1 {offsets = [4, 0], sizes = [1, 512], strides = [1, 1]} : vector<9x512xf32> to vector<1x512xf32>
    %91 = vector.broadcast %90 : vector<1x512xf32> to vector<8x512xf32>
    %92 = arith.mulf %89, %91 : vector<8x512xf32>
    %c32_65 = arith.constant 32 : index
    %c0_66 = arith.constant 0 : index
    %93 = vector.load %arg9[%c32_65, %c0_66] : memref<73x512xf32, #tpu.memory_space<vmem>>, vector<8x512xf32>
    tpu.vector_store %arg9[%c32_65, %c0_66], %92 {strides = array<i32>} : memref<73x512xf32, #tpu.memory_space<vmem>>, vector<8x512xf32>,
    %c0_67 = arith.constant 0 : index
    %c129_68 = arith.constant 129 : index
    %94 = vector.load %arg7[%c0_67, %c129_68] : memref<8x768xf32, #tpu.memory_space<vmem>>, vector<8x512xf32>
    %95 = vector.extract_strided_slice %1 {offsets = [5, 0], sizes = [1, 512], strides = [1, 1]} : vector<9x512xf32> to vector<1x512xf32>
    %96 = vector.broadcast %95 : vector<1x512xf32> to vector<8x512xf32>
    %97 = arith.mulf %94, %96 : vector<8x512xf32>
    %c40_69 = arith.constant 40 : index
    %c0_70 = arith.constant 0 : index
    %98 = vector.load %arg9[%c40_69, %c0_70] : memref<73x512xf32, #tpu.memory_space<vmem>>, vector<8x512xf32>
    tpu.vector_store %arg9[%c40_69, %c0_70], %97 {strides = array<i32>} : memref<73x512xf32, #tpu.memory_space<vmem>>, vector<8x512xf32>,
    %c0_71 = arith.constant 0 : index
    %c143_72 = arith.constant 143 : index
    %99 = vector.load %arg7[%c0_71, %c143_72] : memref<8x768xf32, #tpu.memory_space<vmem>>, vector<8x512xf32>
    %100 = vector.extract_strided_slice %1 {offsets = [6, 0], sizes = [1, 512], strides = [1, 1]} : vector<9x512xf32> to vector<1x512xf32>
    %101 = vector.broadcast %100 : vector<1x512xf32> to vector<8x512xf32>
    %102 = arith.mulf %99, %101 : vector<8x512xf32>
    %c48_73 = arith.constant 48 : index
    %c0_74 = arith.constant 0 : index
    %103 = vector.load %arg9[%c48_73, %c0_74] : memref<73x512xf32, #tpu.memory_space<vmem>>, vector<8x512xf32>
    tpu.vector_store %arg9[%c48_73, %c0_74], %102 {strides = array<i32>} : memref<73x512xf32, #tpu.memory_space<vmem>>, vector<8x512xf32>,
    %c0_75 = arith.constant 0 : index
    %c144_76 = arith.constant 144 : index
    %104 = vector.load %arg7[%c0_75, %c144_76] : memref<8x768xf32, #tpu.memory_space<vmem>>, vector<8x512xf32>
    %105 = vector.extract_strided_slice %1 {offsets = [7, 0], sizes = [1, 512], strides = [1, 1]} : vector<9x512xf32> to vector<1x512xf32>
    %106 = vector.broadcast %105 : vector<1x512xf32> to vector<8x512xf32>
    %107 = arith.mulf %104, %106 : vector<8x512xf32>
    %c56_77 = arith.constant 56 : index
    %c0_78 = arith.constant 0 : index
    %108 = vector.load %arg9[%c56_77, %c0_78] : memref<73x512xf32, #tpu.memory_space<vmem>>, vector<8x512xf32>
    tpu.vector_store %arg9[%c56_77, %c0_78], %107 {strides = array<i32>} : memref<73x512xf32, #tpu.memory_space<vmem>>, vector<8x512xf32>,
    %c0_79 = arith.constant 0 : index
    %c145_80 = arith.constant 145 : index
    %109 = vector.load %arg7[%c0_79, %c145_80] : memref<8x768xf32, #tpu.memory_space<vmem>>, vector<8x512xf32>
    %110 = vector.extract_strided_slice %1 {offsets = [8, 0], sizes = [1, 512], strides = [1, 1]} : vector<9x512xf32> to vector<1x512xf32>
    %111 = vector.broadcast %110 : vector<1x512xf32> to vector<8x512xf32>
    %112 = arith.mulf %109, %111 : vector<8x512xf32>
    %c64_81 = arith.constant 64 : index
    %c0_82 = arith.constant 0 : index
    %113 = vector.load %arg9[%c64_81, %c0_82] : memref<73x512xf32, #tpu.memory_space<vmem>>, vector<8x512xf32>
    tpu.vector_store %arg9[%c64_81, %c0_82], %112 {strides = array<i32>} : memref<73x512xf32, #tpu.memory_space<vmem>>, vector<8x512xf32>,
    %cst_83 = arith.constant 1.000000e+00 : f32
    %114 = vector.broadcast %cst_83 : f32 to vector<1x512xf32>
    %c72_84 = arith.constant 72 : index
    %c0_85 = arith.constant 0 : index
    %115 = vector.load %arg9[%c72_84, %c0_85] : memref<73x512xf32, #tpu.memory_space<vmem>>, vector<1x512xf32>
    tpu.vector_store %arg9[%c72_84, %c0_85], %114 {strides = array<i32>} : memref<73x512xf32, #tpu.memory_space<vmem>>, vector<1x512xf32>,
    %c0_86 = arith.constant 0 : index
    %c0_87 = arith.constant 0 : index
    %116 = vector.load %arg9[%c0_86, %c0_87] : memref<73x512xf32, #tpu.memory_space<vmem>>, vector<73x512xf32>
    %cst_88 = arith.constant dense<0.000000e+00> : vector<4x512xf32>
    %117 = tpu.matmul %63, %116, %cst_88 {dimension_numbers = #tpu.dot_dimension_numbers<[1], [0], [0], [1], [0, 0, 1, 1], [], []>} : vector<4x73xf32>, vector<73x512xf32>, vector<4x512xf32> -> vector<4x512xf32>
    %118 = arith.addf %62, %117 : vector<4x512xf32>
    %cst_89 = arith.constant 0.000000e+00 : f32
    %119 = vector.broadcast %cst_89 : f32 to vector<4x512xf32>
    %120 = arith.cmpf oge, %118, %119 : vector<4x512xf32>
    %cst_90 = arith.constant 0.00999999977 : f32
    %121 = vector.broadcast %cst_90 : f32 to vector<4x512xf32>
    %122 = arith.mulf %121, %118 : vector<4x512xf32>
    %123 = arith.select %120, %118, %122 : vector<4x512xi1>, vector<4x512xf32>
    %c0_91 = arith.constant 0 : index
    %c0_92 = arith.constant 0 : index
    %124 = vector.load %arg5[%c0_91, %c0_92] : memref<4x512xf32, #tpu.memory_space<vmem>>, vector<4x512xf32>
    tpu.vector_store %arg5[%c0_91, %c0_92], %123 {strides = array<i32>} : memref<4x512xf32, #tpu.memory_space<vmem>>, vector<4x512xf32>,
    return
  }
  func.func @transform_0(%arg0: i32) -> (i32, i32) {
    %c0_i32 = arith.constant 0 : i32
    %c0_i32_0 = arith.constant 0 : i32
    return %c0_i32, %arg0 : i32, i32
  }
  func.func @transform_1(%arg0: i32) -> (i32, i32) {
    %c0_i32 = arith.constant 0 : i32
    %c0_i32_0 = arith.constant 0 : i32
    %c0_i32_1 = arith.constant 0 : i32
    return %c0_i32, %c0_i32_0 : i32, i32
  }
  func.func @transform_2(%arg0: i32) -> (i32, i32) {
    %c0_i32 = arith.constant 0 : i32
    %c0_i32_0 = arith.constant 0 : i32
    %c0_i32_1 = arith.constant 0 : i32
    return %c0_i32, %c0_i32_0 : i32, i32
  }
  func.func @transform_3(%arg0: i32) -> (i32, i32) {
    %c0_i32 = arith.constant 0 : i32
    %c0_i32_0 = arith.constant 0 : i32
    %c0_i32_1 = arith.constant 0 : i32
    return %c0_i32, %c0_i32_0 : i32, i32
  }
  func.func @transform_4(%arg0: i32) -> (i32, i32) {
    %c0_i32 = arith.constant 0 : i32
    %c0_i32_0 = arith.constant 0 : i32
    return %c0_i32, %arg0 : i32, i32
  }
}

</mosaic_0001>

<llo_original>
// kernel: tpu_custom_call.1
$region0: #{tpu_custom_call.1}
  #allocation0 [shape = 'u32[]', space=smem, size = 0x4, offset = 0x4, fixed_abs, tag = 'smem constant byte address 0x4 - core index']
  #allocation1 [shape = 'u32[144,128]{1,0:T(1,128)}', space=vmem, size = 0x12000, scoped, tag = 'internal scratch']
  #allocation2 [shape = 'f32[8,768]{1,0:T(8,128)}', space=vmem, size = 0x6000, scoped, tag = 'scratch operand']
  #allocation3 [shape = 'f32[8,768]{1,0:T(8,128)}', space=vmem, size = 0x6000, scoped, tag = 'scratch operand']
  #allocation4 [shape = 'f32[73,512]{1,0:T(8,128)}', space=vmem, size = 0x28000, scoped, tag = 'scratch operand']
  #allocation5 [shape = 'f32[73,512]{1,0:T(8,128)}', space=vmem, size = 0x28000, scoped, tag = 'scratch operand']
  %s0 = inlined_call_operand.hbm [shape: f32[8,512], index: 0, kind: input, shape index: {}]
  %s1 = inlined_call_operand.hbm [shape: f32[9,512], index: 1, kind: input, shape index: {}]
  %s2 = inlined_call_operand.hbm [shape: f32[8,73], index: 2, kind: input, shape index: {}]
  %s3 = inlined_call_operand.vmem [shape: f32[4,73], index: 3, kind: input, shape index: {}]
  %s4 = inlined_call_operand.hbm [shape: f32[4,512], index: 4, kind: output, shape index: {}]
  %s5 = sld [smem:[#allocation0]]
  $region38: #{tpu_custom_call.1} parent=0
    _
  %s7 = ssub.s32 1, %s5
  %s8 = scalar_select 0, %s7, %s5
  $region1: #{tpu_custom_call.1} parent=0
    #allocation6 [shape = 'u8[16384]{0}', space=vmem, size = 0x4000, scoped, tag = 'input window, operand 0, single buffered']
    #allocation7 [shape = 's32[1]{0}', space=sflag, size = 0x4, scoped, tag = 'scoped memory for tpu_custom_call.1']
    #allocation8 [shape = 's32[1]{0}', space=sflag, size = 0x4, scoped, tag = 'scoped memory for tpu_custom_call.1']
    #allocation9 [shape = 'u8[32768]{0}', space=vmem, size = 0x8000, scoped, tag = 'input window, operand 1, single buffered']
    #allocation10 [shape = 's32[1]{0}', space=sflag, size = 0x4, scoped, tag = 'scoped memory for tpu_custom_call.1']
    #allocation11 [shape = 'u8[4096]{0}', space=vmem, size = 0x1000, scoped, tag = 'input window, operand 2, single buffered']
    #allocation12 [shape = 'u8[8192]{0}', space=vmem, size = 0x2000, scoped, tag = 'output window, operand 0, single buffered']
    %9 = vsyncpa [#allocation7], 0
    %10 = vsyncpa [#allocation10], 0
    %11 = vsyncpa [#allocation8], 0
    // Predicated region
    $region2: #{tpu_custom_call.1} parent=1 // pred_check
      _
    $region3: #{tpu_custom_call.1} parent=1 // pred_check_branch
      %13 = sbr.rel (0) target = $region5
    $region4: #{tpu_custom_call.1} parent=1 // pred_region
      %s15 = ssub.s32 512, 512
      %16 = vsyncadd [#allocation7], %s15
      %s18 = sshll.u32 [#allocation6], 4
      %s19 = int_to_ptr.vmem [resolvable:$true] %s18
      %21 = dma.hbm_to_vmem [thread:$0]  %s0, 512, %s19, [#allocation7]
    $region5: #{tpu_custom_call.1} parent=1 // pred_fallthru
      _
    // Predicated region
    $region6: #{tpu_custom_call.1} parent=1 // pred_check
      _
    $region7: #{tpu_custom_call.1} parent=1 // pred_check_branch
      %23 = sbr.rel (0) target = $region9
    $region8: #{tpu_custom_call.1} parent=1 // pred_region
      %s25 = ssub.s32 1024, 1024
      %26 = vsyncadd [#allocation10], %s25
      %s27 = sshll.u32 [#allocation9], 4
      %s28 = int_to_ptr.vmem [resolvable:$true] %s27
      %33 = dma.hbm_to_vmem [thread:$0]  %s1, 1024, %s28, [#allocation10], 512, 512, 32
    $region9: #{tpu_custom_call.1} parent=1 // pred_fallthru
      _
    // Predicated region
    $region10: #{tpu_custom_call.1} parent=1 // pred_check
      _
    $region11: #{tpu_custom_call.1} parent=1 // pred_check_branch
      %35 = sbr.rel (0) target = $region13
    $region12: #{tpu_custom_call.1} parent=1 // pred_region
      %s37 = ssub.s32 128, 128
      %38 = vsyncadd [#allocation10], %s37
      %s40 = sshll.u32 [#allocation11], 4
      %s41 = int_to_ptr.vmem [resolvable:$true] %s40
      %43 = dma.hbm_to_vmem [thread:$0]  %s2, 128, %s41, [#allocation10]
    $region13: #{tpu_custom_call.1} parent=1 // pred_fallthru
      _
    // Predicated region
    $region14: #{tpu_custom_call.1} parent=1 // pred_check
      _
    $region15: #{tpu_custom_call.1} parent=1 // pred_check_branch
      %45 = sbr.rel (0) target = $region17
    $region16: #{tpu_custom_call.1} parent=1 // pred_region
      _
    $region17: #{tpu_custom_call.1} parent=1 // pred_fallthru
      _
    // Predicated region
    $region18: #{tpu_custom_call.1} parent=1 // pred_check
      _
    $region19: #{tpu_custom_call.1} parent=1 // pred_check_branch
      %47 = sbr.rel (0) target = $region21
    $region20: #{tpu_custom_call.1} parent=1 // pred_region
      %48 = dma.done [#allocation7], 512
    $region21: #{tpu_custom_call.1} parent=1 // pred_fallthru
      _
    // Predicated region
    $region22: #{tpu_custom_call.1} parent=1 // pred_check
      _
    $region23: #{tpu_custom_call.1} parent=1 // pred_check_branch
      %50 = sbr.rel (0) target = $region25
    $region24: #{tpu_custom_call.1} parent=1 // pred_region
      %51 = dma.done [#allocation10], 1024
    $region25: #{tpu_custom_call.1} parent=1 // pred_fallthru
      _
    // Predicated region
    $region26: #{tpu_custom_call.1} parent=1 // pred_check
      _
    $region27: #{tpu_custom_call.1} parent=1 // pred_check_branch
      %53 = sbr.rel (0) target = $region29
    $region28: #{tpu_custom_call.1} parent=1 // pred_region
      %54 = dma.done [#allocation10], 128
    $region29: #{tpu_custom_call.1} parent=1 // pred_fallthru
      _
    %v55 = vld [vmem:[#allocation6] sm:$0xff]
    %v56 = vld [vmem:[#allocation6 + $0x8] sm:$0xff]
    %v57 = vld [vmem:[#allocation6 + $0x10] sm:$0xff]
    %v58 = vld [vmem:[#allocation6 + $0x18] sm:$0xff]
    %v59 = vld [vmem:[#allocation9] sm:$0xff]
    %v60 = vld [vmem:[#allocation9 + $0x8] sm:$0xff]
    %v61 = vld [vmem:[#allocation9 + $0x10] sm:$0xff]
    %v62 = vld [vmem:[#allocation9 + $0x18] sm:$0xff]
    %v63 = vld [vmem:[#allocation9 + $0x20] sm:$0x1]
    %v64 = vld [vmem:[#allocation9 + $0x28] sm:$0x1]
    %v65 = vld [vmem:[#allocation9 + $0x30] sm:$0x1]
    %v66 = vld [vmem:[#allocation9 + $0x38] sm:$0x1]
    %v67 = vld [vmem:[#allocation11] sm:$0xff]
    %68 = vst [vmem:[#allocation2] sm:$0xff] 0.0
    %69 = vst [vmem:[#allocation2 + $0x28] sm:$0xff] 0.0
    %70 = vst [vmem:[#allocation2 + $0x8] sm:$0xff] %v55
    %71 = vst [vmem:[#allocation2 + $0x10] sm:$0xff] %v56
    %72 = vst [vmem:[#allocation2 + $0x18] sm:$0xff] %v57
    %73 = vst [vmem:[#allocation2 + $0x20] sm:$0xff] %v58
    %v74 = vld [vmem:[#allocation2] sm:$0xff]
    %v75 = vld [vmem:[#allocation2 + $0x8] sm:$0xff]
    %v76 = vld [vmem:[#allocation2 + $0x10] sm:$0xff]
    %v77 = vld [vmem:[#allocation2 + $0x18] sm:$0xff]
    %v78 = vld [vmem:[#allocation2 + $0x20] sm:$0xff]
    %v79 = vlaneseq
    %v80 = vshrl.u32 %v79, 7
    %v81 = vsub.s32 0, %v80
    %v82 = vrot.slane %v59, %v81
    %v83 = vlaneseq
    %v84 = vshrl.u32 %v83, 7
    %v85 = vsub.s32 0, %v84
    %v86 = vrot.slane %v60, %v85
    %v87 = vlaneseq
    %v88 = vshrl.u32 %v87, 7
    %v89 = vsub.s32 0, %v88
    %v90 = vrot.slane %v61, %v89
    %v91 = vlaneseq
    %v92 = vshrl.u32 %v91, 7
    %v93 = vsub.s32 0, %v92
    %v94 = vrot.slane %v62, %v93
    %99 = vrot.lane.b32.xlu0 %v82, 111
    %v100 = vpop.permute.xlu0 %99
    %101 = vrot.lane.b32.xlu0 %v86, 111
    %v102 = vpop.permute.xlu0 %101
    %103 = vrot.lane.b32.xlu0 %v90, 111
    %v104 = vpop.permute.xlu0 %103
    %105 = vrot.lane.b32.xlu0 %v94, 111
    %v106 = vpop.permute.xlu0 %105
    %vm107 = vcmask 908288
    %v108 = vsel %vm107, %v100, %v102
    %v109 = vsel %vm107, %v102, %v104
    %v110 = vsel %vm107, %v104, %v106
    %v116 = vmul.f32 %v74, %v100
    %v117 = vmul.f32 %v75, %v108
    %v118 = vmul.f32 %v76, %v109
    %v119 = vmul.f32 %v77, %v110
    %v120 = vmul.f32 %v78, %v106
    %126 = vrot.lane.b32.xlu0 %v116, 17
    %v127 = vpop.permute.xlu0 %126
    %128 = vrot.lane.b32.xlu0 %v117, 17
    %v129 = vpop.permute.xlu0 %128
    %130 = vrot.lane.b32.xlu0 %v118, 17
    %v131 = vpop.permute.xlu0 %130
    %132 = vrot.lane.b32.xlu0 %v119, 17
    %v133 = vpop.permute.xlu0 %132
    %134 = vrot.lane.b32.xlu0 %v120, 17
    %v135 = vpop.permute.xlu0 %134
    %vm136 = vcmask 138240
    %v137 = vsel %vm136, %v127, %v129
    %v138 = vsel %vm136, %v129, %v131
    %v139 = vsel %vm136, %v131, %v133
    %v140 = vsel %vm136, %v133, %v135
    %145 = vst [vmem:[#allocation4] sm:$0xff] %v137
    %146 = vst [vmem:[#allocation4 + $0x8] sm:$0xff] %v138
    %147 = vst [vmem:[#allocation4 + $0x10] sm:$0xff] %v139
    %148 = vst [vmem:[#allocation4 + $0x18] sm:$0xff] %v140
    %v149 = vld [vmem:[#allocation2] sm:$0xff]
    %v150 = vld [vmem:[#allocation2 + $0x8] sm:$0xff]
    %v151 = vld [vmem:[#allocation2 + $0x10] sm:$0xff]
    %v152 = vld [vmem:[#allocation2 + $0x18] sm:$0xff]
    %v153 = vld [vmem:[#allocation2 + $0x20] sm:$0xff]
    %v154 = vlaneseq
    %v155 = vshrl.u32 %v154, 7
    %v156 = vsub.s32 1, %v155
    %v157 = vrot.slane %v59, %v156
    %v158 = vlaneseq
    %v159 = vshrl.u32 %v158, 7
    %v160 = vsub.s32 1, %v159
    %v161 = vrot.slane %v60, %v160
    %v162 = vlaneseq
    %v163 = vshrl.u32 %v162, 7
    %v164 = vsub.s32 1, %v163
    %v165 = vrot.slane %v61, %v164
    %v166 = vlaneseq
    %v167 = vshrl.u32 %v166, 7
    %v168 = vsub.s32 1, %v167
    %v169 = vrot.slane %v62, %v168
    %174 = vrot.lane.b32.xlu0 %v157, 112
    %v175 = vpop.permute.xlu0 %174
    %176 = vrot.lane.b32.xlu0 %v161, 112
    %v177 = vpop.permute.xlu0 %176
    %178 = vrot.lane.b32.xlu0 %v165, 112
    %v179 = vpop.permute.xlu0 %178
    %180 = vrot.lane.b32.xlu0 %v169, 112
    %v181 = vpop.permute.xlu0 %180
    %vm182 = vcmask 916480
    %v183 = vsel %vm182, %v175, %v177
    %v184 = vsel %vm182, %v177, %v179
    %v185 = vsel %vm182, %v179, %v181
    %v191 = vmul.f32 %v149, %v175
    %v192 = vmul.f32 %v150, %v183
    %v193 = vmul.f32 %v151, %v184
    %v194 = vmul.f32 %v152, %v185
    %v195 = vmul.f32 %v153, %v181
    %201 = vrot.lane.b32.xlu0 %v191, 16
    %v202 = vpop.permute.xlu0 %201
    %203 = vrot.lane.b32.xlu0 %v192, 16
    %v204 = vpop.permute.xlu0 %203
    %205 = vrot.lane.b32.xlu0 %v193, 16
    %v206 = vpop.permute.xlu0 %205
    %207 = vrot.lane.b32.xlu0 %v194, 16
    %v208 = vpop.permute.xlu0 %207
    %209 = vrot.lane.b32.xlu0 %v195, 16
    %v210 = vpop.permute.xlu0 %209
    %vm211 = vcmask 130048
    %v212 = vsel %vm211, %v202, %v204
    %v213 = vsel %vm211, %v204, %v206
    %v214 = vsel %vm211, %v206, %v208
    %v215 = vsel %vm211, %v208, %v210
    %220 = vst [vmem:[#allocation4 + $0x20] sm:$0xff] %v212
    %221 = vst [vmem:[#allocation4 + $0x28] sm:$0xff] %v213
    %222 = vst [vmem:[#allocation4 + $0x30] sm:$0xff] %v214
    %223 = vst [vmem:[#allocation4 + $0x38] sm:$0xff] %v215
    %v224 = vld [vmem:[#allocation2] sm:$0xff]
    %v225 = vld [vmem:[#allocation2 + $0x8] sm:$0xff]
    %v226 = vld [vmem:[#allocation2 + $0x10] sm:$0xff]
    %v227 = vld [vmem:[#allocation2 + $0x18] sm:$0xff]
    %v228 = vld [vmem:[#allocation2 + $0x20] sm:$0xff]
    %v229 = vlaneseq
    %v230 = vshrl.u32 %v229, 7
    %v231 = vsub.s32 2, %v230
    %v232 = vrot.slane %v59, %v231
    %v233 = vlaneseq
    %v234 = vshrl.u32 %v233, 7
    %v235 = vsub.s32 2, %v234
    %v236 = vrot.slane %v60, %v235
    %v237 = vlaneseq
    %v238 = vshrl.u32 %v237, 7
    %v239 = vsub.s32 2, %v238
    %v240 = vrot.slane %v61, %v239
    %v241 = vlaneseq
    %v242 = vshrl.u32 %v241, 7
    %v243 = vsub.s32 2, %v242
    %v244 = vrot.slane %v62, %v243
    %249 = vrot.lane.b32.xlu0 %v232, 113
    %v250 = vpop.permute.xlu0 %249
    %251 = vrot.lane.b32.xlu0 %v236, 113
    %v252 = vpop.permute.xlu0 %251
    %253 = vrot.lane.b32.xlu0 %v240, 113
    %v254 = vpop.permute.xlu0 %253
    %255 = vrot.lane.b32.xlu0 %v244, 113
    %v256 = vpop.permute.xlu0 %255
    %vm257 = vcmask 924672
    %v258 = vsel %vm257, %v250, %v252
    %v259 = vsel %vm257, %v252, %v254
    %v260 = vsel %vm257, %v254, %v256
    %v266 = vmul.f32 %v224, %v250
    %v267 = vmul.f32 %v225, %v258
    %v268 = vmul.f32 %v226, %v259
    %v269 = vmul.f32 %v227, %v260
    %v270 = vmul.f32 %v228, %v256
    %276 = vrot.lane.b32.xlu0 %v266, 15
    %v277 = vpop.permute.xlu0 %276
    %278 = vrot.lane.b32.xlu0 %v267, 15
    %v279 = vpop.permute.xlu0 %278
    %280 = vrot.lane.b32.xlu0 %v268, 15
    %v281 = vpop.permute.xlu0 %280
    %282 = vrot.lane.b32.xlu0 %v269, 15
    %v283 = vpop.permute.xlu0 %282
    %284 = vrot.lane.b32.xlu0 %v270, 15
    %v285 = vpop.permute.xlu0 %284
    %vm286 = vcmask 121856
    %v287 = vsel %vm286, %v277, %v279
    %v288 = vsel %vm286, %v279, %v281
    %v289 = vsel %vm286, %v281, %v283
    %v290 = vsel %vm286, %v283, %v285
    %295 = vst [vmem:[#allocation4 + $0x40] sm:$0xff] %v287
    %296 = vst [vmem:[#allocation4 + $0x48] sm:$0xff] %v288
    %297 = vst [vmem:[#allocation4 + $0x50] sm:$0xff] %v289
    %298 = vst [vmem:[#allocation4 + $0x58] sm:$0xff] %v290
    %v299 = vld [vmem:[#allocation2] sm:$0xff]
    %v300 = vld [vmem:[#allocation2 + $0x8] sm:$0xff]
    %v301 = vld [vmem:[#allocation2 + $0x10] sm:$0xff]
    %v302 = vld [vmem:[#allocation2 + $0x18] sm:$0xff]
    %v303 = vld [vmem:[#allocation2 + $0x20] sm:$0xff]
    %v304 = vlaneseq
    %v305 = vshrl.u32 %v304, 7
    %v306 = vsub.s32 3, %v305
    %v307 = vrot.slane %v59, %v306
    %v308 = vlaneseq
    %v309 = vshrl.u32 %v308, 7
    %v310 = vsub.s32 3, %v309
    %v311 = vrot.slane %v60, %v310
    %v312 = vlaneseq
    %v313 = vshrl.u32 %v312, 7
    %v314 = vsub.s32 3, %v313
    %v315 = vrot.slane %v61, %v314
    %v316 = vlaneseq
    %v317 = vshrl.u32 %v316, 7
    %v318 = vsub.s32 3, %v317
    %v319 = vrot.slane %v62, %v318
    %324 = vrot.lane.b32.xlu0 %v307, 127
    %v325 = vpop.permute.xlu0 %324
    %326 = vrot.lane.b32.xlu0 %v311, 127
    %v327 = vpop.permute.xlu0 %326
    %328 = vrot.lane.b32.xlu0 %v315, 127
    %v329 = vpop.permute.xlu0 %328
    %330 = vrot.lane.b32.xlu0 %v319, 127
    %v331 = vpop.permute.xlu0 %330
    %vm332 = vcmask 1039360
    %v333 = vsel %vm332, %v325, %v327
    %v334 = vsel %vm332, %v327, %v329
    %v335 = vsel %vm332, %v329, %v331
    %v341 = vmul.f32 %v299, %v325
    %v342 = vmul.f32 %v300, %v333
    %v343 = vmul.f32 %v301, %v334
    %v344 = vmul.f32 %v302, %v335
    %v345 = vmul.f32 %v303, %v331
    %351 = vrot.lane.b32.xlu0 %v341, 1
    %v352 = vpop.permute.xlu0 %351
    %353 = vrot.lane.b32.xlu0 %v342, 1
    %v354 = vpop.permute.xlu0 %353
    %355 = vrot.lane.b32.xlu0 %v343, 1
    %v356 = vpop.permute.xlu0 %355
    %357 = vrot.lane.b32.xlu0 %v344, 1
    %v358 = vpop.permute.xlu0 %357
    %359 = vrot.lane.b32.xlu0 %v345, 1
    %v360 = vpop.permute.xlu0 %359
    %vm361 = vcmask 7168
    %v362 = vsel %vm361, %v352, %v354
    %v363 = vsel %vm361, %v354, %v356
    %v364 = vsel %vm361, %v356, %v358
    %v365 = vsel %vm361, %v358, %v360
    %370 = vst [vmem:[#allocation4 + $0x60] sm:$0xff] %v362
    %371 = vst [vmem:[#allocation4 + $0x68] sm:$0xff] %v363
    %372 = vst [vmem:[#allocation4 + $0x70] sm:$0xff] %v364
    %373 = vst [vmem:[#allocation4 + $0x78] sm:$0xff] %v365
    %v374 = vld [vmem:[#allocation2 + $0x8] sm:$0xff]
    %v375 = vld [vmem:[#allocation2 + $0x10] sm:$0xff]
    %v376 = vld [vmem:[#allocation2 + $0x18] sm:$0xff]
    %v377 = vld [vmem:[#allocation2 + $0x20] sm:$0xff]
    %v378 = vlaneseq
    %v379 = vshrl.u32 %v378, 7
    %v380 = vsub.s32 4, %v379
    %v381 = vrot.slane %v59, %v380
    %v382 = vlaneseq
    %v383 = vshrl.u32 %v382, 7
    %v384 = vsub.s32 4, %v383
    %v385 = vrot.slane %v60, %v384
    %v386 = vlaneseq
    %v387 = vshrl.u32 %v386, 7
    %v388 = vsub.s32 4, %v387
    %v389 = vrot.slane %v61, %v388
    %v390 = vlaneseq
    %v391 = vshrl.u32 %v390, 7
    %v392 = vsub.s32 4, %v391
    %v393 = vrot.slane %v62, %v392
    %v394 = vmul.f32 %v374, %v381
    %v395 = vmul.f32 %v375, %v385
    %v396 = vmul.f32 %v376, %v389
    %v397 = vmul.f32 %v377, %v393
    %398 = vst [vmem:[#allocation4 + $0x80] sm:$0xff] %v394
    %399 = vst [vmem:[#allocation4 + $0x88] sm:$0xff] %v395
    %400 = vst [vmem:[#allocation4 + $0x90] sm:$0xff] %v396
    %401 = vst [vmem:[#allocation4 + $0x98] sm:$0xff] %v397
    %v402 = vld [vmem:[#allocation2 + $0x8] sm:$0xff]
    %v403 = vld [vmem:[#allocation2 + $0x10] sm:$0xff]
    %v404 = vld [vmem:[#allocation2 + $0x18] sm:$0xff]
    %v405 = vld [vmem:[#allocation2 + $0x20] sm:$0xff]
    %v406 = vld [vmem:[#allocation2 + $0x28] sm:$0xff]
    %v407 = vlaneseq
    %v408 = vshrl.u32 %v407, 7
    %v409 = vsub.s32 5, %v408
    %v410 = vrot.slane %v59, %v409
    %v411 = vlaneseq
    %v412 = vshrl.u32 %v411, 7
    %v413 = vsub.s32 5, %v412
    %v414 = vrot.slane %v60, %v413
    %v415 = vlaneseq
    %v416 = vshrl.u32 %v415, 7
    %v417 = vsub.s32 5, %v416
    %v418 = vrot.slane %v61, %v417
    %v419 = vlaneseq
    %v420 = vshrl.u32 %v419, 7
    %v421 = vsub.s32 5, %v420
    %v422 = vrot.slane %v62, %v421
    %427 = vrot.lane.b32.xlu0 %v410, 1
    %v428 = vpop.permute.xlu0 %427
    %429 = vrot.lane.b32.xlu0 %v414, 1
    %v430 = vpop.permute.xlu0 %429
    %431 = vrot.lane.b32.xlu0 %v418, 1
    %v432 = vpop.permute.xlu0 %431
    %433 = vrot.lane.b32.xlu0 %v422, 1
    %v434 = vpop.permute.xlu0 %433
    %v435 = vsel %vm361, %v428, %v430
    %v436 = vsel %vm361, %v430, %v432
    %v437 = vsel %vm361, %v432, %v434
    %v443 = vmul.f32 %v402, %v428
    %v444 = vmul.f32 %v403, %v435
    %v445 = vmul.f32 %v404, %v436
    %v446 = vmul.f32 %v405, %v437
    %v447 = vmul.f32 %v406, %v434
    %453 = vrot.lane.b32.xlu0 %v443, 127
    %v454 = vpop.permute.xlu0 %453
    %455 = vrot.lane.b32.xlu0 %v444, 127
    %v456 = vpop.permute.xlu0 %455
    %457 = vrot.lane.b32.xlu0 %v445, 127
    %v458 = vpop.permute.xlu0 %457
    %459 = vrot.lane.b32.xlu0 %v446, 127
    %v460 = vpop.permute.xlu0 %459
    %461 = vrot.lane.b32.xlu0 %v447, 127
    %v462 = vpop.permute.xlu0 %461
    %v463 = vsel %vm332, %v454, %v456
    %v464 = vsel %vm332, %v456, %v458
    %v465 = vsel %vm332, %v458, %v460
    %v466 = vsel %vm332, %v460, %v462
    %471 = vst [vmem:[#allocation4 + $0xa0] sm:$0xff] %v463
    %472 = vst [vmem:[#allocation4 + $0xa8] sm:$0xff] %v464
    %473 = vst [vmem:[#allocation4 + $0xb0] sm:$0xff] %v465
    %474 = vst [vmem:[#allocation4 + $0xb8] sm:$0xff] %v466
    %v475 = vld [vmem:[#allocation2 + $0x8] sm:$0xff]
    %v476 = vld [vmem:[#allocation2 + $0x10] sm:$0xff]
    %v477 = vld [vmem:[#allocation2 + $0x18] sm:$0xff]
    %v478 = vld [vmem:[#allocation2 + $0x20] sm:$0xff]
    %v479 = vld [vmem:[#allocation2 + $0x28] sm:$0xff]
    %v480 = vlaneseq
    %v481 = vshrl.u32 %v480, 7
    %v482 = vsub.s32 6, %v481
    %v483 = vrot.slane %v59, %v482
    %v484 = vlaneseq
    %v485 = vshrl.u32 %v484, 7
    %v486 = vsub.s32 6, %v485
    %v487 = vrot.slane %v60, %v486
    %v488 = vlaneseq
    %v489 = vshrl.u32 %v488, 7
    %v490 = vsub.s32 6, %v489
    %v491 = vrot.slane %v61, %v490
    %v492 = vlaneseq
    %v493 = vshrl.u32 %v492, 7
    %v494 = vsub.s32 6, %v493
    %v495 = vrot.slane %v62, %v494
    %500 = vrot.lane.b32.xlu0 %v483, 15
    %v501 = vpop.permute.xlu0 %500
    %502 = vrot.lane.b32.xlu0 %v487, 15
    %v503 = vpop.permute.xlu0 %502
    %504 = vrot.lane.b32.xlu0 %v491, 15
    %v505 = vpop.permute.xlu0 %504
    %506 = vrot.lane.b32.xlu0 %v495, 15
    %v507 = vpop.permute.xlu0 %506
    %v508 = vsel %vm286, %v501, %v503
    %v509 = vsel %vm286, %v503, %v505
    %v510 = vsel %vm286, %v505, %v507
    %v516 = vmul.f32 %v475, %v501
    %v517 = vmul.f32 %v476, %v508
    %v518 = vmul.f32 %v477, %v509
    %v519 = vmul.f32 %v478, %v510
    %v520 = vmul.f32 %v479, %v507
    %526 = vrot.lane.b32.xlu0 %v516, 113
    %v527 = vpop.permute.xlu0 %526
    %528 = vrot.lane.b32.xlu0 %v517, 113
    %v529 = vpop.permute.xlu0 %528
    %530 = vrot.lane.b32.xlu0 %v518, 113
    %v531 = vpop.permute.xlu0 %530
    %532 = vrot.lane.b32.xlu0 %v519, 113
    %v533 = vpop.permute.xlu0 %532
    %534 = vrot.lane.b32.xlu0 %v520, 113
    %v535 = vpop.permute.xlu0 %534
    %v536 = vsel %vm257, %v527, %v529
    %v537 = vsel %vm257, %v529, %v531
    %v538 = vsel %vm257, %v531, %v533
    %v539 = vsel %vm257, %v533, %v535
    %544 = vst [vmem:[#allocation4 + $0xc0] sm:$0xff] %v536
    %545 = vst [vmem:[#allocation4 + $0xc8] sm:$0xff] %v537
    %546 = vst [vmem:[#allocation4 + $0xd0] sm:$0xff] %v538
    %547 = vst [vmem:[#allocation4 + $0xd8] sm:$0xff] %v539
    %v548 = vld [vmem:[#allocation2 + $0x8] sm:$0xff]
    %v549 = vld [vmem:[#allocation2 + $0x10] sm:$0xff]
    %v550 = vld [vmem:[#allocation2 + $0x18] sm:$0xff]
    %v551 = vld [vmem:[#allocation2 + $0x20] sm:$0xff]
    %v552 = vld [vmem:[#allocation2 + $0x28] sm:$0xff]
    %v553 = vlaneseq
    %v554 = vshrl.u32 %v553, 7
    %v555 = vsub.s32 7, %v554
    %v556 = vrot.slane %v59, %v555
    %v557 = vlaneseq
    %v558 = vshrl.u32 %v557, 7
    %v559 = vsub.s32 7, %v558
    %v560 = vrot.slane %v60, %v559
    %v561 = vlaneseq
    %v562 = vshrl.u32 %v561, 7
    %v563 = vsub.s32 7, %v562
    %v564 = vrot.slane %v61, %v563
    %v565 = vlaneseq
    %v566 = vshrl.u32 %v565, 7
    %v567 = vsub.s32 7, %v566
    %v568 = vrot.slane %v62, %v567
    %573 = vrot.lane.b32.xlu0 %v556, 16
    %v574 = vpop.permute.xlu0 %573
    %575 = vrot.lane.b32.xlu0 %v560, 16
    %v576 = vpop.permute.xlu0 %575
    %577 = vrot.lane.b32.xlu0 %v564, 16
    %v578 = vpop.permute.xlu0 %577
    %579 = vrot.lane.b32.xlu0 %v568, 16
    %v580 = vpop.permute.xlu0 %579
    %v581 = vsel %vm211, %v574, %v576
    %v582 = vsel %vm211, %v576, %v578
    %v583 = vsel %vm211, %v578, %v580
    %v589 = vmul.f32 %v548, %v574
    %v590 = vmul.f32 %v549, %v581
    %v591 = vmul.f32 %v550, %v582
    %v592 = vmul.f32 %v551, %v583
    %v593 = vmul.f32 %v552, %v580
    %599 = vrot.lane.b32.xlu0 %v589, 112
    %v600 = vpop.permute.xlu0 %599
    %601 = vrot.lane.b32.xlu0 %v590, 112
    %v602 = vpop.permute.xlu0 %601
    %603 = vrot.lane.b32.xlu0 %v591, 112
    %v604 = vpop.permute.xlu0 %603
    %605 = vrot.lane.b32.xlu0 %v592, 112
    %v606 = vpop.permute.xlu0 %605
    %607 = vrot.lane.b32.xlu0 %v593, 112
    %v608 = vpop.permute.xlu0 %607
    %v609 = vsel %vm182, %v600, %v602
    %v610 = vsel %vm182, %v602, %v604
    %v611 = vsel %vm182, %v604, %v606
    %v612 = vsel %vm182, %v606, %v608
    %617 = vst [vmem:[#allocation4 + $0xe0] sm:$0xff] %v609
    %618 = vst [vmem:[#allocation4 + $0xe8] sm:$0xff] %v610
    %619 = vst [vmem:[#allocation4 + $0xf0] sm:$0xff] %v611
    %620 = vst [vmem:[#allocation4 + $0xf8] sm:$0xff] %v612
    %v621 = vld [vmem:[#allocation2 + $0x8] sm:$0xff]
    %v622 = vld [vmem:[#allocation2 + $0x10] sm:$0xff]
    %v623 = vld [vmem:[#allocation2 + $0x18] sm:$0xff]
    %v624 = vld [vmem:[#allocation2 + $0x20] sm:$0xff]
    %v625 = vld [vmem:[#allocation2 + $0x28] sm:$0xff]
    %v626 = vlaneseq
    %v627 = vshrl.u32 %v626, 7
    %v628 = vsub.s32 0, %v627
    %v629 = vrot.slane %v63, %v628
    %v630 = vlaneseq
    %v631 = vshrl.u32 %v630, 7
    %v632 = vsub.s32 0, %v631
    %v633 = vrot.slane %v64, %v632
    %v634 = vlaneseq
    %v635 = vshrl.u32 %v634, 7
    %v636 = vsub.s32 0, %v635
    %v637 = vrot.slane %v65, %v636
    %v638 = vlaneseq
    %v639 = vshrl.u32 %v638, 7
    %v640 = vsub.s32 0, %v639
    %v641 = vrot.slane %v66, %v640
    %646 = vrot.lane.b32.xlu0 %v629, 17
    %v647 = vpop.permute.xlu0 %646
    %648 = vrot.lane.b32.xlu0 %v633, 17
    %v649 = vpop.permute.xlu0 %648
    %650 = vrot.lane.b32.xlu0 %v637, 17
    %v651 = vpop.permute.xlu0 %650
    %652 = vrot.lane.b32.xlu0 %v641, 17
    %v653 = vpop.permute.xlu0 %652
    %v654 = vsel %vm136, %v647, %v649
    %v655 = vsel %vm136, %v649, %v651
    %v656 = vsel %vm136, %v651, %v653
    %v662 = vmul.f32 %v621, %v647
    %v663 = vmul.f32 %v622, %v654
    %v664 = vmul.f32 %v623, %v655
    %v665 = vmul.f32 %v624, %v656
    %v666 = vmul.f32 %v625, %v653
    %672 = vrot.lane.b32.xlu0 %v662, 111
    %v673 = vpop.permute.xlu0 %672
    %674 = vrot.lane.b32.xlu0 %v663, 111
    %v675 = vpop.permute.xlu0 %674
    %676 = vrot.lane.b32.xlu0 %v664, 111
    %v677 = vpop.permute.xlu0 %676
    %678 = vrot.lane.b32.xlu0 %v665, 111
    %v679 = vpop.permute.xlu0 %678
    %680 = vrot.lane.b32.xlu0 %v666, 111
    %v681 = vpop.permute.xlu0 %680
    %v682 = vsel %vm107, %v673, %v675
    %v683 = vsel %vm107, %v675, %v677
    %v684 = vsel %vm107, %v677, %v679
    %v685 = vsel %vm107, %v679, %v681
    %690 = vst [vmem:[#allocation4 + $0x100] sm:$0xff] %v682
    %691 = vst [vmem:[#allocation4 + $0x108] sm:$0xff] %v683
    %692 = vst [vmem:[#allocation4 + $0x110] sm:$0xff] %v684
    %693 = vst [vmem:[#allocation4 + $0x118] sm:$0xff] %v685
    %v694 = vlaneseq
    %vm695 = vcmp.ge.s32.totalorder %v694, 0
    %vm696 = vcmp.lt.s32.totalorder %v694, 512
    %vm697 = vmand %vm695, %vm696
    %s698 = scalar_lea.vmem [#allocation4], 288
    %699 = vst.msk [vmem:[%s698] ss:$8 sm:$0xf] %vm697, 1.0
    %700 = vst.msk [vmem:[%s698] ss:$8 sm:$0x0] %vm697, 1.0
    %v701 = vld [vmem:[#allocation4] sm:$0xff]
    %v702 = vld [vmem:[#allocation4 + $0x8] sm:$0xff]
    %v703 = vld [vmem:[#allocation4 + $0x10] sm:$0xff]
    %v704 = vld [vmem:[#allocation4 + $0x18] sm:$0xff]
    %v705 = vld [vmem:[#allocation4 + $0x20] sm:$0xff]
    %v706 = vld [vmem:[#allocation4 + $0x28] sm:$0xff]
    %v707 = vld [vmem:[#allocation4 + $0x30] sm:$0xff]
    %v708 = vld [vmem:[#allocation4 + $0x38] sm:$0xff]
    %v709 = vld [vmem:[#allocation4 + $0x40] sm:$0xff]
    %v710 = vld [vmem:[#allocation4 + $0x48] sm:$0xff]
    %v711 = vld [vmem:[#allocation4 + $0x50] sm:$0xff]
    %v712 = vld [vmem:[#allocation4 + $0x58] sm:$0xff]
    %v713 = vld [vmem:[#allocation4 + $0x60] sm:$0xff]
    %v714 = vld [vmem:[#allocation4 + $0x68] sm:$0xff]
    %v715 = vld [vmem:[#allocation4 + $0x70] sm:$0xff]
    %v716 = vld [vmem:[#allocation4 + $0x78] sm:$0xff]
    %v717 = vld [vmem:[#allocation4 + $0x80] sm:$0xff]
    %v718 = vld [vmem:[#allocation4 + $0x88] sm:$0xff]
    %v719 = vld [vmem:[#allocation4 + $0x90] sm:$0xff]
    %v720 = vld [vmem:[#allocation4 + $0x98] sm:$0xff]
    %v721 = vld [vmem:[#allocation4 + $0xa0] sm:$0xff]
    %v722 = vld [vmem:[#allocation4 + $0xa8] sm:$0xff]
    %v723 = vld [vmem:[#allocation4 + $0xb0] sm:$0xff]
    %v724 = vld [vmem:[#allocation4 + $0xb8] sm:$0xff]
    %v725 = vld [vmem:[#allocation4 + $0xc0] sm:$0xff]
    %v726 = vld [vmem:[#allocation4 + $0xc8] sm:$0xff]
    %v727 = vld [vmem:[#allocation4 + $0xd0] sm:$0xff]
    %v728 = vld [vmem:[#allocation4 + $0xd8] sm:$0xff]
    %v729 = vld [vmem:[#allocation4 + $0xe0] sm:$0xff]
    %v730 = vld [vmem:[#allocation4 + $0xe8] sm:$0xff]
    %v731 = vld [vmem:[#allocation4 + $0xf0] sm:$0xff]
    %v732 = vld [vmem:[#allocation4 + $0xf8] sm:$0xff]
    %v733 = vld [vmem:[#allocation4 + $0x100] sm:$0xff]
    %v734 = vld [vmem:[#allocation4 + $0x108] sm:$0xff]
    %v735 = vld [vmem:[#allocation4 + $0x110] sm:$0xff]
    %v736 = vld [vmem:[#allocation4 + $0x118] sm:$0xff]
    %v737 = vld [vmem:[#allocation4 + $0x120] sm:$0x1]
    %v738 = vld [vmem:[#allocation4 + $0x128] sm:$0x1]
    %v739 = vld [vmem:[#allocation4 + $0x130] sm:$0x1]
    %v740 = vld [vmem:[#allocation4 + $0x138] sm:$0x1]
    %vm741 = vcmask 596992
    %v743 = vsel %vm741, %v67, 0
    %vm745 = vcmask 1040384
    %v747 = vsel %vm745, %v737, 0
    %v750 = vsel %vm745, %v738, 0
    %v753 = vsel %vm745, %v739, 0
    %v756 = vsel %vm745, %v740, 0
    %758 = vmatprep.subr.mxu0 %v702
    %759 = vmatpush1.msra.mxu0 %v701
    %760 = vmatprep.subr.mxu0 %v706
    %761 = vmatpush1.msra.mxu0 %v705
    %762 = vmatprep.subr.mxu0 %v710
    %763 = vmatpush1.msra.mxu0 %v709
    %764 = vmatprep.subr.mxu0 %v714
    %765 = vmatpush1.msra.mxu0 %v713
    %766 = vmatprep.subr.mxu0 %v718
    %767 = vmatpush1.msra.mxu0 %v717
    %768 = vmatprep.subr.mxu0 %v722
    %769 = vmatpush1.msra.mxu0 %v721
    %770 = vmatprep.subr.mxu0 %v726
    %771 = vmatpush1.msra.mxu0 %v725
    %772 = vmatprep.subr.mxu0 %v730
    %773 = vmatpush1.msra.mxu0 %v729
    %774 = vmatprep.subr.mxu0 %v734
    %775 = vmatpush1.msra.mxu0 %v733
    %776 = vmatprep.subr.mxu0 %v750
    %777 = vmatpush1.msra.mxu0 %v747
    %778 = vmatprep.subr.mxu0 0.0
    %779 = vmatpush1.msra.mxu0 0.0
    %780 = vmatprep.subr.mxu0 0.0
    %781 = vmatpush1.msra.mxu0 0.0
    %782 = vmatprep.subr.mxu0 0.0
    %783 = vmatpush1.msra.mxu0 0.0
    %784 = vmatprep.subr.mxu0 0.0
    %785 = vmatpush1.msra.mxu0 0.0
    %786 = vmatprep.subr.mxu0 0.0
    %787 = vmatpush1.msra.mxu0 0.0
    %788 = vmatprep.subr.mxu0 0.0
    %789 = vmatpush1.msra.mxu0 0.0
    %790 = vmatprep.subr.mxu0 0.0
    %791 = vmatpush1.msra.mxu0 0.0
    %792 = vmatprep.subr.mxu0 0.0
    %793 = vmatpush1.msra.mxu0 0.0
    %794 = vmatprep.subr.mxu0 0.0
    %795 = vmatpush1.msra.mxu0 0.0
    %796 = vmatprep.subr.mxu0 0.0
    %797 = vmatpush1.msra.mxu0 0.0
    %798 = vmatprep.subr.mxu0 0.0
    %799 = vmatpush1.msra.mxu0 0.0
    %800 = vmatprep.subr.mxu0 0.0
    %801 = vmatpush1.msra.mxu0 0.0
    %802 = vmatprep.subr.mxu0 0.0
    %803 = vmatpush1.msra.mxu0 0.0
    %804 = vmatprep.subr.mxu0 0.0
    %805 = vmatpush1.msra.mxu0 0.0
    %806 = vmatprep.subr.mxu0 0.0
    %807 = vmatpush1.msra.mxu0 0.0
    %808 = vmatprep.subr.mxu0 0.0
    %809 = vmatpush1.msra.mxu0 0.0
    %810 = vmatprep.subr.mxu0 0.0
    %811 = vmatpush1.msra.mxu0 0.0
    %812 = vmatprep.subr.mxu0 0.0
    %813 = vmatpush1.msra.mxu0 0.0
    %814 = vmatprep.subr.mxu0 0.0
    %815 = vmatpush1.msra.mxu0 0.0
    %816 = vmatprep.subr.mxu0 0.0
    %817 = vmatpush1.msra.mxu0 0.0
    %818 = vmatprep.subr.mxu0 0.0
    %819 = vmatpush1.msra.mxu0 0.0
    %820 = vmatprep.subr.mxu0 0.0
    %821 = vmatpush1.msra.mxu0 0.0
    %822 = vmatprep.mubr.f32.mxu0 0.0
    %823 = vmatmul.mubr.f32.gmra.mrb[0].mxu0 %v743
    %v824 = vpop.f32.mrb[0].mxu0
    %v825 = vadd.f32 0.0, %v824
    %v826 = vpop.f32.mrb[0].mxu0
    %v827 = vadd.f32 0.0, %v826
    %828 = vdwg.mxu0
    %829 = vmatprep.subr.mxu0 %v704
    %830 = vmatpush1.msra.mxu0 %v703
    %831 = vmatprep.subr.mxu0 %v708
    %832 = vmatpush1.msra.mxu0 %v707
    %833 = vmatprep.subr.mxu0 %v712
    %834 = vmatpush1.msra.mxu0 %v711
    %835 = vmatprep.subr.mxu0 %v716
    %836 = vmatpush1.msra.mxu0 %v715
    %837 = vmatprep.subr.mxu0 %v720
    %838 = vmatpush1.msra.mxu0 %v719
    %839 = vmatprep.subr.mxu0 %v724
    %840 = vmatpush1.msra.mxu0 %v723
    %841 = vmatprep.subr.mxu0 %v728
    %842 = vmatpush1.msra.mxu0 %v727
    %843 = vmatprep.subr.mxu0 %v732
    %844 = vmatpush1.msra.mxu0 %v731
    %845 = vmatprep.subr.mxu0 %v736
    %846 = vmatpush1.msra.mxu0 %v735
    %847 = vmatprep.subr.mxu0 %v756
    %848 = vmatpush1.msra.mxu0 %v753
    %849 = vmatprep.subr.mxu0 0.0
    %850 = vmatpush1.msra.mxu0 0.0
    %851 = vmatprep.subr.mxu0 0.0
    %852 = vmatpush1.msra.mxu0 0.0
    %853 = vmatprep.subr.mxu0 0.0
    %854 = vmatpush1.msra.mxu0 0.0
    %855 = vmatprep.subr.mxu0 0.0
    %856 = vmatpush1.msra.mxu0 0.0
    %857 = vmatprep.subr.mxu0 0.0
    %858 = vmatpush1.msra.mxu0 0.0
    %859 = vmatprep.subr.mxu0 0.0
    %860 = vmatpush1.msra.mxu0 0.0
    %861 = vmatprep.subr.mxu0 0.0
    %862 = vmatpush1.msra.mxu0 0.0
    %863 = vmatprep.subr.mxu0 0.0
    %864 = vmatpush1.msra.mxu0 0.0
    %865 = vmatprep.subr.mxu0 0.0
    %866 = vmatpush1.msra.mxu0 0.0
    %867 = vmatprep.subr.mxu0 0.0
    %868 = vmatpush1.msra.mxu0 0.0
    %869 = vmatprep.subr.mxu0 0.0
    %870 = vmatpush1.msra.mxu0 0.0
    %871 = vmatprep.subr.mxu0 0.0
    %872 = vmatpush1.msra.mxu0 0.0
    %873 = vmatprep.subr.mxu0 0.0
    %874 = vmatpush1.msra.mxu0 0.0
    %875 = vmatprep.subr.mxu0 0.0
    %876 = vmatpush1.msra.mxu0 0.0
    %877 = vmatprep.subr.mxu0 0.0
    %878 = vmatpush1.msra.mxu0 0.0
    %879 = vmatprep.subr.mxu0 0.0
    %880 = vmatpush1.msra.mxu0 0.0
    %881 = vmatprep.subr.mxu0 0.0
    %882 = vmatpush1.msra.mxu0 0.0
    %883 = vmatprep.subr.mxu0 0.0
    %884 = vmatpush1.msra.mxu0 0.0
    %885 = vmatprep.subr.mxu0 0.0
    %886 = vmatpush1.msra.mxu0 0.0
    %887 = vmatprep.subr.mxu0 0.0
    %888 = vmatpush1.msra.mxu0 0.0
    %889 = vmatprep.subr.mxu0 0.0
    %890 = vmatpush1.msra.mxu0 0.0
    %891 = vmatprep.subr.mxu0 0.0
    %892 = vmatpush1.msra.mxu0 0.0
    %893 = vmatprep.mubr.f32.mxu0 0.0
    %894 = vmatmul.mubr.f32.gmra.mrb[0].mxu0 %v743
    %v895 = vpop.f32.mrb[0].mxu0
    %v896 = vadd.f32 0.0, %v895
    %v897 = vpop.f32.mrb[0].mxu0
    %v898 = vadd.f32 0.0, %v897
    %899 = vdwg.mxu0
    %vm900 = vcmp.ge.f32.partialorder %v825, 0.0
    %vm901 = vcmp.ge.f32.partialorder %v827, 0.0
    %vm902 = vcmp.ge.f32.partialorder %v896, 0.0
    %vm903 = vcmp.ge.f32.partialorder %v898, 0.0
    %v904 = vmul.f32 %v825, 0.01
    %v905 = vmul.f32 %v827, 0.01
    %v906 = vmul.f32 %v896, 0.01
    %v907 = vmul.f32 %v898, 0.01
    %v908 = vsel %vm900, %v825, %v904
    %v909 = vsel %vm901, %v827, %v905
    %v910 = vsel %vm902, %v896, %v906
    %v911 = vsel %vm903, %v898, %v907
    %v912 = vld [vmem:[%s3] sm:$0xf]
    %913 = vst [vmem:[#allocation3] sm:$0xff] 0.0
    %914 = vst [vmem:[#allocation3 + $0x28] sm:$0xff] 0.0
    %915 = vst [vmem:[#allocation3 + $0x8] sm:$0xff] %v908
    %916 = vst [vmem:[#allocation3 + $0x10] sm:$0xff] %v909
    %917 = vst [vmem:[#allocation3 + $0x18] sm:$0xff] %v910
    %918 = vst [vmem:[#allocation3 + $0x20] sm:$0xff] %v911
    %v919 = vld [vmem:[#allocation3] sm:$0xff]
    %v920 = vld [vmem:[#allocation3 + $0x8] sm:$0xff]
    %v921 = vld [vmem:[#allocation3 + $0x10] sm:$0xff]
    %v922 = vld [vmem:[#allocation3 + $0x18] sm:$0xff]
    %v923 = vld [vmem:[#allocation3 + $0x20] sm:$0xff]
    %v924 = vmul.f32 %v919, %v100
    %v925 = vmul.f32 %v920, %v108
    %v926 = vmul.f32 %v921, %v109
    %v927 = vmul.f32 %v922, %v110
    %v928 = vmul.f32 %v923, %v106
    %934 = vrot.lane.b32.xlu0 %v924, 17
    %v935 = vpop.permute.xlu0 %934
    %936 = vrot.lane.b32.xlu0 %v925, 17
    %v937 = vpop.permute.xlu0 %936
    %938 = vrot.lane.b32.xlu0 %v926, 17
    %v939 = vpop.permute.xlu0 %938
    %940 = vrot.lane.b32.xlu0 %v927, 17
    %v941 = vpop.permute.xlu0 %940
    %942 = vrot.lane.b32.xlu0 %v928, 17
    %v943 = vpop.permute.xlu0 %942
    %v944 = vsel %vm136, %v935, %v937
    %v945 = vsel %vm136, %v937, %v939
    %v946 = vsel %vm136, %v939, %v941
    %v947 = vsel %vm136, %v941, %v943
    %952 = vst [vmem:[#allocation5] sm:$0xff] %v944
    %953 = vst [vmem:[#allocation5 + $0x8] sm:$0xff] %v945
    %954 = vst [vmem:[#allocation5 + $0x10] sm:$0xff] %v946
    %955 = vst [vmem:[#allocation5 + $0x18] sm:$0xff] %v947
    %v956 = vld [vmem:[#allocation3] sm:$0xff]
    %v957 = vld [vmem:[#allocation3 + $0x8] sm:$0xff]
    %v958 = vld [vmem:[#allocation3 + $0x10] sm:$0xff]
    %v959 = vld [vmem:[#allocation3 + $0x18] sm:$0xff]
    %v960 = vld [vmem:[#allocation3 + $0x20] sm:$0xff]
    %v961 = vmul.f32 %v956, %v175
    %v962 = vmul.f32 %v957, %v183
    %v963 = vmul.f32 %v958, %v184
    %v964 = vmul.f32 %v959, %v185
    %v965 = vmul.f32 %v960, %v181
    %971 = vrot.lane.b32.xlu0 %v961, 16
    %v972 = vpop.permute.xlu0 %971
    %973 = vrot.lane.b32.xlu0 %v962, 16
    %v974 = vpop.permute.xlu0 %973
    %975 = vrot.lane.b32.xlu0 %v963, 16
    %v976 = vpop.permute.xlu0 %975
    %977 = vrot.lane.b32.xlu0 %v964, 16
    %v978 = vpop.permute.xlu0 %977
    %979 = vrot.lane.b32.xlu0 %v965, 16
    %v980 = vpop.permute.xlu0 %979
    %v981 = vsel %vm211, %v972, %v974
    %v982 = vsel %vm211, %v974, %v976
    %v983 = vsel %vm211, %v976, %v978
    %v984 = vsel %vm211, %v978, %v980
    %989 = vst [vmem:[#allocation5 + $0x20] sm:$0xff] %v981
    %990 = vst [vmem:[#allocation5 + $0x28] sm:$0xff] %v982
    %991 = vst [vmem:[#allocation5 + $0x30] sm:$0xff] %v983
    %992 = vst [vmem:[#allocation5 + $0x38] sm:$0xff] %v984
    %v993 = vld [vmem:[#allocation3] sm:$0xff]
    %v994 = vld [vmem:[#allocation3 + $0x8] sm:$0xff]
    %v995 = vld [vmem:[#allocation3 + $0x10] sm:$0xff]
    %v996 = vld [vmem:[#allocation3 + $0x18] sm:$0xff]
    %v997 = vld [vmem:[#allocation3 + $0x20] sm:$0xff]
    %v998 = vmul.f32 %v993, %v250
    %v999 = vmul.f32 %v994, %v258
    %v1000 = vmul.f32 %v995, %v259
    %v1001 = vmul.f32 %v996, %v260
    %v1002 = vmul.f32 %v997, %v256
    %1008 = vrot.lane.b32.xlu0 %v998, 15
    %v1009 = vpop.permute.xlu0 %1008
    %1010 = vrot.lane.b32.xlu0 %v999, 15
    %v1011 = vpop.permute.xlu0 %1010
    %1012 = vrot.lane.b32.xlu0 %v1000, 15
    %v1013 = vpop.permute.xlu0 %1012
    %1014 = vrot.lane.b32.xlu0 %v1001, 15
    %v1015 = vpop.permute.xlu0 %1014
    %1016 = vrot.lane.b32.xlu0 %v1002, 15
    %v1017 = vpop.permute.xlu0 %1016
    %v1018 = vsel %vm286, %v1009, %v1011
    %v1019 = vsel %vm286, %v1011, %v1013
    %v1020 = vsel %vm286, %v1013, %v1015
    %v1021 = vsel %vm286, %v1015, %v1017
    %1026 = vst [vmem:[#allocation5 + $0x40] sm:$0xff] %v1018
    %1027 = vst [vmem:[#allocation5 + $0x48] sm:$0xff] %v1019
    %1028 = vst [vmem:[#allocation5 + $0x50] sm:$0xff] %v1020
    %1029 = vst [vmem:[#allocation5 + $0x58] sm:$0xff] %v1021
    %v1030 = vld [vmem:[#allocation3] sm:$0xff]
    %v1031 = vld [vmem:[#allocation3 + $0x8] sm:$0xff]
    %v1032 = vld [vmem:[#allocation3 + $0x10] sm:$0xff]
    %v1033 = vld [vmem:[#allocation3 + $0x18] sm:$0xff]
    %v1034 = vld [vmem:[#allocation3 + $0x20] sm:$0xff]
    %v1035 = vmul.f32 %v1030, %v325
    %v1036 = vmul.f32 %v1031, %v333
    %v1037 = vmul.f32 %v1032, %v334
    %v1038 = vmul.f32 %v1033, %v335
    %v1039 = vmul.f32 %v1034, %v331
    %1045 = vrot.lane.b32.xlu0 %v1035, 1
    %v1046 = vpop.permute.xlu0 %1045
    %1047 = vrot.lane.b32.xlu0 %v1036, 1
    %v1048 = vpop.permute.xlu0 %1047
    %1049 = vrot.lane.b32.xlu0 %v1037, 1
    %v1050 = vpop.permute.xlu0 %1049
    %1051 = vrot.lane.b32.xlu0 %v1038, 1
    %v1052 = vpop.permute.xlu0 %1051
    %1053 = vrot.lane.b32.xlu0 %v1039, 1
    %v1054 = vpop.permute.xlu0 %1053
    %v1055 = vsel %vm361, %v1046, %v1048
    %v1056 = vsel %vm361, %v1048, %v1050
    %v1057 = vsel %vm361, %v1050, %v1052
    %v1058 = vsel %vm361, %v1052, %v1054
    %1063 = vst [vmem:[#allocation5 + $0x60] sm:$0xff] %v1055
    %1064 = vst [vmem:[#allocation5 + $0x68] sm:$0xff] %v1056
    %1065 = vst [vmem:[#allocation5 + $0x70] sm:$0xff] %v1057
    %1066 = vst [vmem:[#allocation5 + $0x78] sm:$0xff] %v1058
    %v1067 = vld [vmem:[#allocation3 + $0x8] sm:$0xff]
    %v1068 = vld [vmem:[#allocation3 + $0x10] sm:$0xff]
    %v1069 = vld [vmem:[#allocation3 + $0x18] sm:$0xff]
    %v1070 = vld [vmem:[#allocation3 + $0x20] sm:$0xff]
    %v1071 = vmul.f32 %v1067, %v381
    %v1072 = vmul.f32 %v1068, %v385
    %v1073 = vmul.f32 %v1069, %v389
    %v1074 = vmul.f32 %v1070, %v393
    %1075 = vst [vmem:[#allocation5 + $0x80] sm:$0xff] %v1071
    %1076 = vst [vmem:[#allocation5 + $0x88] sm:$0xff] %v1072
    %1077 = vst [vmem:[#allocation5 + $0x90] sm:$0xff] %v1073
    %1078 = vst [vmem:[#allocation5 + $0x98] sm:$0xff] %v1074
    %v1079 = vld [vmem:[#allocation3 + $0x8] sm:$0xff]
    %v1080 = vld [vmem:[#allocation3 + $0x10] sm:$0xff]
    %v1081 = vld [vmem:[#allocation3 + $0x18] sm:$0xff]
    %v1082 = vld [vmem:[#allocation3 + $0x20] sm:$0xff]
    %v1083 = vld [vmem:[#allocation3 + $0x28] sm:$0xff]
    %v1084 = vmul.f32 %v1079, %v428
    %v1085 = vmul.f32 %v1080, %v435
    %v1086 = vmul.f32 %v1081, %v436
    %v1087 = vmul.f32 %v1082, %v437
    %v1088 = vmul.f32 %v1083, %v434
    %1094 = vrot.lane.b32.xlu0 %v1084, 127
    %v1095 = vpop.permute.xlu0 %1094
    %1096 = vrot.lane.b32.xlu0 %v1085, 127
    %v1097 = vpop.permute.xlu0 %1096
    %1098 = vrot.lane.b32.xlu0 %v1086, 127
    %v1099 = vpop.permute.xlu0 %1098
    %1100 = vrot.lane.b32.xlu0 %v1087, 127
    %v1101 = vpop.permute.xlu0 %1100
    %1102 = vrot.lane.b32.xlu0 %v1088, 127
    %v1103 = vpop.permute.xlu0 %1102
    %v1104 = vsel %vm332, %v1095, %v1097
    %v1105 = vsel %vm332, %v1097, %v1099
    %v1106 = vsel %vm332, %v1099, %v1101
    %v1107 = vsel %vm332, %v1101, %v1103
    %1112 = vst [vmem:[#allocation5 + $0xa0] sm:$0xff] %v1104
    %1113 = vst [vmem:[#allocation5 + $0xa8] sm:$0xff] %v1105
    %1114 = vst [vmem:[#allocation5 + $0xb0] sm:$0xff] %v1106
    %1115 = vst [vmem:[#allocation5 + $0xb8] sm:$0xff] %v1107
    %v1116 = vld [vmem:[#allocation3 + $0x8] sm:$0xff]
    %v1117 = vld [vmem:[#allocation3 + $0x10] sm:$0xff]
    %v1118 = vld [vmem:[#allocation3 + $0x18] sm:$0xff]
    %v1119 = vld [vmem:[#allocation3 + $0x20] sm:$0xff]
    %v1120 = vld [vmem:[#allocation3 + $0x28] sm:$0xff]
    %v1121 = vmul.f32 %v1116, %v501
    %v1122 = vmul.f32 %v1117, %v508
    %v1123 = vmul.f32 %v1118, %v509
    %v1124 = vmul.f32 %v1119, %v510
    %v1125 = vmul.f32 %v1120, %v507
    %1131 = vrot.lane.b32.xlu0 %v1121, 113
    %v1132 = vpop.permute.xlu0 %1131
    %1133 = vrot.lane.b32.xlu0 %v1122, 113
    %v1134 = vpop.permute.xlu0 %1133
    %1135 = vrot.lane.b32.xlu0 %v1123, 113
    %v1136 = vpop.permute.xlu0 %1135
    %1137 = vrot.lane.b32.xlu0 %v1124, 113
    %v1138 = vpop.permute.xlu0 %1137
    %1139 = vrot.lane.b32.xlu0 %v1125, 113
    %v1140 = vpop.permute.xlu0 %1139
    %v1141 = vsel %vm257, %v1132, %v1134
    %v1142 = vsel %vm257, %v1134, %v1136
    %v1143 = vsel %vm257, %v1136, %v1138
    %v1144 = vsel %vm257, %v1138, %v1140
    %1149 = vst [vmem:[#allocation5 + $0xc0] sm:$0xff] %v1141
    %1150 = vst [vmem:[#allocation5 + $0xc8] sm:$0xff] %v1142
    %1151 = vst [vmem:[#allocation5 + $0xd0] sm:$0xff] %v1143
    %1152 = vst [vmem:[#allocation5 + $0xd8] sm:$0xff] %v1144
    %v1153 = vld [vmem:[#allocation3 + $0x8] sm:$0xff]
    %v1154 = vld [vmem:[#allocation3 + $0x10] sm:$0xff]
    %v1155 = vld [vmem:[#allocation3 + $0x18] sm:$0xff]
    %v1156 = vld [vmem:[#allocation3 + $0x20] sm:$0xff]
    %v1157 = vld [vmem:[#allocation3 + $0x28] sm:$0xff]
    %v1158 = vmul.f32 %v1153, %v574
    %v1159 = vmul.f32 %v1154, %v581
    %v1160 = vmul.f32 %v1155, %v582
    %v1161 = vmul.f32 %v1156, %v583
    %v1162 = vmul.f32 %v1157, %v580
    %1168 = vrot.lane.b32.xlu0 %v1158, 112
    %v1169 = vpop.permute.xlu0 %1168
    %1170 = vrot.lane.b32.xlu0 %v1159, 112
    %v1171 = vpop.permute.xlu0 %1170
    %1172 = vrot.lane.b32.xlu0 %v1160, 112
    %v1173 = vpop.permute.xlu0 %1172
    %1174 = vrot.lane.b32.xlu0 %v1161, 112
    %v1175 = vpop.permute.xlu0 %1174
    %1176 = vrot.lane.b32.xlu0 %v1162, 112
    %v1177 = vpop.permute.xlu0 %1176
    %v1178 = vsel %vm182, %v1169, %v1171
    %v1179 = vsel %vm182, %v1171, %v1173
    %v1180 = vsel %vm182, %v1173, %v1175
    %v1181 = vsel %vm182, %v1175, %v1177
    %1186 = vst [vmem:[#allocation5 + $0xe0] sm:$0xff] %v1178
    %1187 = vst [vmem:[#allocation5 + $0xe8] sm:$0xff] %v1179
    %1188 = vst [vmem:[#allocation5 + $0xf0] sm:$0xff] %v1180
    %1189 = vst [vmem:[#allocation5 + $0xf8] sm:$0xff] %v1181
    %v1190 = vld [vmem:[#allocation3 + $0x8] sm:$0xff]
    %v1191 = vld [vmem:[#allocation3 + $0x10] sm:$0xff]
    %v1192 = vld [vmem:[#allocation3 + $0x18] sm:$0xff]
    %v1193 = vld [vmem:[#allocation3 + $0x20] sm:$0xff]
    %v1194 = vld [vmem:[#allocation3 + $0x28] sm:$0xff]
    %v1195 = vmul.f32 %v1190, %v647
    %v1196 = vmul.f32 %v1191, %v654
    %v1197 = vmul.f32 %v1192, %v655
    %v1198 = vmul.f32 %v1193, %v656
    %v1199 = vmul.f32 %v1194, %v653
    %1205 = vrot.lane.b32.xlu0 %v1195, 111
    %v1206 = vpop.permute.xlu0 %1205
    %1207 = vrot.lane.b32.xlu0 %v1196, 111
    %v1208 = vpop.permute.xlu0 %1207
    %1209 = vrot.lane.b32.xlu0 %v1197, 111
    %v1210 = vpop.permute.xlu0 %1209
    %1211 = vrot.lane.b32.xlu0 %v1198, 111
    %v1212 = vpop.permute.xlu0 %1211
    %1213 = vrot.lane.b32.xlu0 %v1199, 111
    %v1214 = vpop.permute.xlu0 %1213
    %v1215 = vsel %vm107, %v1206, %v1208
    %v1216 = vsel %vm107, %v1208, %v1210
    %v1217 = vsel %vm107, %v1210, %v1212
    %v1218 = vsel %vm107, %v1212, %v1214
    %1223 = vst [vmem:[#allocation5 + $0x100] sm:$0xff] %v1215
    %1224 = vst [vmem:[#allocation5 + $0x108] sm:$0xff] %v1216
    %1225 = vst [vmem:[#allocation5 + $0x110] sm:$0xff] %v1217
    %1226 = vst [vmem:[#allocation5 + $0x118] sm:$0xff] %v1218
    %s1227 = scalar_lea.vmem [#allocation5], 288
    %1228 = vst.msk [vmem:[%s1227] ss:$8 sm:$0xf] %vm697, 1.0
    %1229 = vst.msk [vmem:[%s1227] ss:$8 sm:$0x0] %vm697, 1.0
    %v1230 = vld [vmem:[#allocation5] sm:$0xff]
    %v1231 = vld [vmem:[#allocation5 + $0x8] sm:$0xff]
    %v1232 = vld [vmem:[#allocation5 + $0x10] sm:$0xff]
    %v1233 = vld [vmem:[#allocation5 + $0x18] sm:$0xff]
    %v1234 = vld [vmem:[#allocation5 + $0x20] sm:$0xff]
    %v1235 = vld [vmem:[#allocation5 + $0x28] sm:$0xff]
    %v1236 = vld [vmem:[#allocation5 + $0x30] sm:$0xff]
    %v1237 = vld [vmem:[#allocation5 + $0x38] sm:$0xff]
    %v1238 = vld [vmem:[#allocation5 + $0x40] sm:$0xff]
    %v1239 = vld [vmem:[#allocation5 + $0x48] sm:$0xff]
    %v1240 = vld [vmem:[#allocation5 + $0x50] sm:$0xff]
    %v1241 = vld [vmem:[#allocation5 + $0x58] sm:$0xff]
    %v1242 = vld [vmem:[#allocation5 + $0x60] sm:$0xff]
    %v1243 = vld [vmem:[#allocation5 + $0x68] sm:$0xff]
    %v1244 = vld [vmem:[#allocation5 + $0x70] sm:$0xff]
    %v1245 = vld [vmem:[#allocation5 + $0x78] sm:$0xff]
    %v1246 = vld [vmem:[#allocation5 + $0x80] sm:$0xff]
    %v1247 = vld [vmem:[#allocation5 + $0x88] sm:$0xff]
    %v1248 = vld [vmem:[#allocation5 + $0x90] sm:$0xff]
    %v1249 = vld [vmem:[#allocation5 + $0x98] sm:$0xff]
    %v1250 = vld [vmem:[#allocation5 + $0xa0] sm:$0xff]
    %v1251 = vld [vmem:[#allocation5 + $0xa8] sm:$0xff]
    %v1252 = vld [vmem:[#allocation5 + $0xb0] sm:$0xff]
    %v1253 = vld [vmem:[#allocation5 + $0xb8] sm:$0xff]
    %v1254 = vld [vmem:[#allocation5 + $0xc0] sm:$0xff]
    %v1255 = vld [vmem:[#allocation5 + $0xc8] sm:$0xff]
    %v1256 = vld [vmem:[#allocation5 + $0xd0] sm:$0xff]
    %v1257 = vld [vmem:[#allocation5 + $0xd8] sm:$0xff]
    %v1258 = vld [vmem:[#allocation5 + $0xe0] sm:$0xff]
    %v1259 = vld [vmem:[#allocation5 + $0xe8] sm:$0xff]
    %v1260 = vld [vmem:[#allocation5 + $0xf0] sm:$0xff]
    %v1261 = vld [vmem:[#allocation5 + $0xf8] sm:$0xff]
    %v1262 = vld [vmem:[#allocation5 + $0x100] sm:$0xff]
    %v1263 = vld [vmem:[#allocation5 + $0x108] sm:$0xff]
    %v1264 = vld [vmem:[#allocation5 + $0x110] sm:$0xff]
    %v1265 = vld [vmem:[#allocation5 + $0x118] sm:$0xff]
    %v1266 = vld [vmem:[#allocation5 + $0x120] sm:$0x1]
    %v1267 = vld [vmem:[#allocation5 + $0x128] sm:$0x1]
    %v1268 = vld [vmem:[#allocation5 + $0x130] sm:$0x1]
    %v1269 = vld [vmem:[#allocation5 + $0x138] sm:$0x1]
    %v1271 = vsel %vm741, %v912, 0
    %v1274 = vsel %vm745, %v1266, 0
    %v1277 = vsel %vm745, %v1267, 0
    %v1280 = vsel %vm745, %v1268, 0
    %v1283 = vsel %vm745, %v1269, 0
    %1285 = vmatprep.subr.mxu0 %v1231
    %1286 = vmatpush1.msra.mxu0 %v1230
    %1287 = vmatprep.subr.mxu0 %v1235
    %1288 = vmatpush1.msra.mxu0 %v1234
    %1289 = vmatprep.subr.mxu0 %v1239
    %1290 = vmatpush1.msra.mxu0 %v1238
    %1291 = vmatprep.subr.mxu0 %v1243
    %1292 = vmatpush1.msra.mxu0 %v1242
    %1293 = vmatprep.subr.mxu0 %v1247
    %1294 = vmatpush1.msra.mxu0 %v1246
    %1295 = vmatprep.subr.mxu0 %v1251
    %1296 = vmatpush1.msra.mxu0 %v1250
    %1297 = vmatprep.subr.mxu0 %v1255
    %1298 = vmatpush1.msra.mxu0 %v1254
    %1299 = vmatprep.subr.mxu0 %v1259
    %1300 = vmatpush1.msra.mxu0 %v1258
    %1301 = vmatprep.subr.mxu0 %v1263
    %1302 = vmatpush1.msra.mxu0 %v1262
    %1303 = vmatprep.subr.mxu0 %v1277
    %1304 = vmatpush1.msra.mxu0 %v1274
    %1305 = vmatprep.subr.mxu0 0.0
    %1306 = vmatpush1.msra.mxu0 0.0
    %1307 = vmatprep.subr.mxu0 0.0
    %1308 = vmatpush1.msra.mxu0 0.0
    %1309 = vmatprep.subr.mxu0 0.0
    %1310 = vmatpush1.msra.mxu0 0.0
    %1311 = vmatprep.subr.mxu0 0.0
    %1312 = vmatpush1.msra.mxu0 0.0
    %1313 = vmatprep.subr.mxu0 0.0
    %1314 = vmatpush1.msra.mxu0 0.0
    %1315 = vmatprep.subr.mxu0 0.0
    %1316 = vmatpush1.msra.mxu0 0.0
    %1317 = vmatprep.subr.mxu0 0.0
    %1318 = vmatpush1.msra.mxu0 0.0
    %1319 = vmatprep.subr.mxu0 0.0
    %1320 = vmatpush1.msra.mxu0 0.0
    %1321 = vmatprep.subr.mxu0 0.0
    %1322 = vmatpush1.msra.mxu0 0.0
    %1323 = vmatprep.subr.mxu0 0.0
    %1324 = vmatpush1.msra.mxu0 0.0
    %1325 = vmatprep.subr.mxu0 0.0
    %1326 = vmatpush1.msra.mxu0 0.0
    %1327 = vmatprep.subr.mxu0 0.0
    %1328 = vmatpush1.msra.mxu0 0.0
    %1329 = vmatprep.subr.mxu0 0.0
    %1330 = vmatpush1.msra.mxu0 0.0
    %1331 = vmatprep.subr.mxu0 0.0
    %1332 = vmatpush1.msra.mxu0 0.0
    %1333 = vmatprep.subr.mxu0 0.0
    %1334 = vmatpush1.msra.mxu0 0.0
    %1335 = vmatprep.subr.mxu0 0.0
    %1336 = vmatpush1.msra.mxu0 0.0
    %1337 = vmatprep.subr.mxu0 0.0
    %1338 = vmatpush1.msra.mxu0 0.0
    %1339 = vmatprep.subr.mxu0 0.0
    %1340 = vmatpush1.msra.mxu0 0.0
    %1341 = vmatprep.subr.mxu0 0.0
    %1342 = vmatpush1.msra.mxu0 0.0
    %1343 = vmatprep.subr.mxu0 0.0
    %1344 = vmatpush1.msra.mxu0 0.0
    %1345 = vmatprep.subr.mxu0 0.0
    %1346 = vmatpush1.msra.mxu0 0.0
    %1347 = vmatprep.subr.mxu0 0.0
    %1348 = vmatpush1.msra.mxu0 0.0
    %1349 = vmatprep.mubr.f32.mxu0 0.0
    %1350 = vmatmul.mubr.f32.gmra.mrb[0].mxu0 %v1271
    %v1351 = vpop.f32.mrb[0].mxu0
    %v1352 = vadd.f32 0.0, %v1351
    %v1353 = vpop.f32.mrb[0].mxu0
    %v1354 = vadd.f32 0.0, %v1353
    %1355 = vdwg.mxu0
    %1356 = vmatprep.subr.mxu0 %v1233
    %1357 = vmatpush1.msra.mxu0 %v1232
    %1358 = vmatprep.subr.mxu0 %v1237
    %1359 = vmatpush1.msra.mxu0 %v1236
    %1360 = vmatprep.subr.mxu0 %v1241
    %1361 = vmatpush1.msra.mxu0 %v1240
    %1362 = vmatprep.subr.mxu0 %v1245
    %1363 = vmatpush1.msra.mxu0 %v1244
    %1364 = vmatprep.subr.mxu0 %v1249
    %1365 = vmatpush1.msra.mxu0 %v1248
    %1366 = vmatprep.subr.mxu0 %v1253
    %1367 = vmatpush1.msra.mxu0 %v1252
    %1368 = vmatprep.subr.mxu0 %v1257
    %1369 = vmatpush1.msra.mxu0 %v1256
    %1370 = vmatprep.subr.mxu0 %v1261
    %1371 = vmatpush1.msra.mxu0 %v1260
    %1372 = vmatprep.subr.mxu0 %v1265
    %1373 = vmatpush1.msra.mxu0 %v1264
    %1374 = vmatprep.subr.mxu0 %v1283
    %1375 = vmatpush1.msra.mxu0 %v1280
    %1376 = vmatprep.subr.mxu0 0.0
    %1377 = vmatpush1.msra.mxu0 0.0
    %1378 = vmatprep.subr.mxu0 0.0
    %1379 = vmatpush1.msra.mxu0 0.0
    %1380 = vmatprep.subr.mxu0 0.0
    %1381 = vmatpush1.msra.mxu0 0.0
    %1382 = vmatprep.subr.mxu0 0.0
    %1383 = vmatpush1.msra.mxu0 0.0
    %1384 = vmatprep.subr.mxu0 0.0
    %1385 = vmatpush1.msra.mxu0 0.0
    %1386 = vmatprep.subr.mxu0 0.0
    %1387 = vmatpush1.msra.mxu0 0.0
    %1388 = vmatprep.subr.mxu0 0.0
    %1389 = vmatpush1.msra.mxu0 0.0
    %1390 = vmatprep.subr.mxu0 0.0
    %1391 = vmatpush1.msra.mxu0 0.0
    %1392 = vmatprep.subr.mxu0 0.0
    %1393 = vmatpush1.msra.mxu0 0.0
    %1394 = vmatprep.subr.mxu0 0.0
    %1395 = vmatpush1.msra.mxu0 0.0
    %1396 = vmatprep.subr.mxu0 0.0
    %1397 = vmatpush1.msra.mxu0 0.0
    %1398 = vmatprep.subr.mxu0 0.0
    %1399 = vmatpush1.msra.mxu0 0.0
    %1400 = vmatprep.subr.mxu0 0.0
    %1401 = vmatpush1.msra.mxu0 0.0
    %1402 = vmatprep.subr.mxu0 0.0
    %1403 = vmatpush1.msra.mxu0 0.0
    %1404 = vmatprep.subr.mxu0 0.0
    %1405 = vmatpush1.msra.mxu0 0.0
    %1406 = vmatprep.subr.mxu0 0.0
    %1407 = vmatpush1.msra.mxu0 0.0
    %1408 = vmatprep.subr.mxu0 0.0
    %1409 = vmatpush1.msra.mxu0 0.0
    %1410 = vmatprep.subr.mxu0 0.0
    %1411 = vmatpush1.msra.mxu0 0.0
    %1412 = vmatprep.subr.mxu0 0.0
    %1413 = vmatpush1.msra.mxu0 0.0
    %1414 = vmatprep.subr.mxu0 0.0
    %1415 = vmatpush1.msra.mxu0 0.0
    %1416 = vmatprep.subr.mxu0 0.0
    %1417 = vmatpush1.msra.mxu0 0.0
    %1418 = vmatprep.subr.mxu0 0.0
    %1419 = vmatpush1.msra.mxu0 0.0
    %1420 = vmatprep.mubr.f32.mxu0 0.0
    %1421 = vmatmul.mubr.f32.gmra.mrb[0].mxu0 %v1271
    %v1422 = vpop.f32.mrb[0].mxu0
    %v1423 = vadd.f32 0.0, %v1422
    %v1424 = vpop.f32.mrb[0].mxu0
    %v1425 = vadd.f32 0.0, %v1424
    %1426 = vdwg.mxu0
    %v1427 = vadd.f32 %v55, %v1352
    %v1428 = vadd.f32 %v56, %v1354
    %v1429 = vadd.f32 %v57, %v1423
    %v1430 = vadd.f32 %v58, %v1425
    %vm1431 = vcmp.ge.f32.partialorder %v1427, 0.0
    %vm1432 = vcmp.ge.f32.partialorder %v1428, 0.0
    %vm1433 = vcmp.ge.f32.partialorder %v1429, 0.0
    %vm1434 = vcmp.ge.f32.partialorder %v1430, 0.0
    %v1435 = vmul.f32 %v1427, 0.01
    %v1436 = vmul.f32 %v1428, 0.01
    %v1437 = vmul.f32 %v1429, 0.01
    %v1438 = vmul.f32 %v1430, 0.01
    %v1439 = vsel %vm1431, %v1427, %v1435
    %v1440 = vsel %vm1432, %v1428, %v1436
    %v1441 = vsel %vm1433, %v1429, %v1437
    %v1442 = vsel %vm1434, %v1430, %v1438
    %v1447 = vcombine.low %v1439, %v1440
    %v1448 = vcombine.low %v1441, %v1442
    %1451 = vst [vmem:[#allocation12] sm:$0xff] %v1447
    %1452 = vst [vmem:[#allocation12 + $0x8] sm:$0xff] %v1448
    // Predicated region
    $region30: #{tpu_custom_call.1} parent=1 // pred_check
      _
    $region31: #{tpu_custom_call.1} parent=1 // pred_check_branch
      %1454 = sbr.rel (0) target = $region33
    $region32: #{tpu_custom_call.1} parent=1 // pred_region
      %s1456 = ssub.s32 256, 256
      %1457 = vsyncadd [#allocation8], %s1456
      %s1459 = sshll.u32 [#allocation12], 4
      %s1460 = int_to_ptr.vmem [resolvable:$true] %s1459
      %1462 = dma.vmem_to_hbm [thread:$0]  %s1460, 256, %s4, [#allocation8]
    $region33: #{tpu_custom_call.1} parent=1 // pred_fallthru
      _
    // Predicated region
    $region34: #{tpu_custom_call.1} parent=1 // pred_check
      _
    $region35: #{tpu_custom_call.1} parent=1 // pred_check_branch
      %1464 = sbr.rel (0) target = $region37
    $region36: #{tpu_custom_call.1} parent=1 // pred_region
      %1465 = dma.done [#allocation8], 256
    $region37: #{tpu_custom_call.1} parent=1 // pred_fallthru
      _
    %1466 = vsyncpa [#allocation7], 1
    %1467 = vsyncpa [#allocation10], 1
    %1468 = vsyncpa [#allocation8], 1

</llo_original>
